<compile_context>
chip_gen: v7x
topology: tpu7x:2x2x1
jax: 0.10.0
libtpu: 0.0.40
codegen_flags: <defaults>
</compile_context>

<pallas_src>
import jax
import jax.numpy as jnp
from jax import lax
from jax.experimental import pallas as pl
from jax.experimental.pallas import tpu as pltpu


# ----------------------------------------------------------------------------
# Pallas kernel: full GRU recurrence + fused fc/relu head for one batch block.
# ----------------------------------------------------------------------------
def _gru_fc_kernel(x_ref,       # (T, bB, F)   time-major input block
                   w_ih_ref,    # (F, 3H)      = weight_ih_l0.T (gate order r,z,n)
                   w_hh_ref,    # (H, 3H)      = weight_hh_l0.T
                   b_ih_ref,    # (1, 3H)
                   b_hh_ref,    # (1, 3H)
                   fc_w_ref,    # (H, F)       = fc.weight.T
                   fc_b_ref,    # (1, F)
                   z_out_ref,   # (T, bB, F)   relu(fc(gru outputs)), time-major
                   hn_out_ref,  # (bB, F)      fc(final hidden), NO relu
                   gi_ref):     # VMEM scratch (T, bB, 3H): staged input projection
    T, bB, F = x_ref.shape
    H = w_hh_ref.shape[0]

    # ---- (1) Hoisted input projection: one MXU matmul for all timesteps, ----
    # staged time-major so each recurrence step is a single leading-index vld.
    x_flat = x_ref[...].reshape(T * bB, F)
    gi_all = (jnp.dot(x_flat, w_ih_ref[...],
                      preferred_element_type=jnp.float32)
              + b_ih_ref[...])                      # (T*bB, 3H)
    gi_ref[...] = gi_all.reshape(T, bB, 3 * H)

    w_hh = w_hh_ref[...]          # hoisted loads (JAX does not CSE ref reads)
    b_hh = b_hh_ref[...]

    # ---- (2) Serial GRU recurrence (fully unrolled; hidden history lives ----
    # entirely in vregs — the whole history is < 1 vreg at these sizes).
    h = jnp.zeros((bB, H), jnp.float32)             # h0 = 0 (torch default)
    hs = []
    for t in range(T):                              # T static -> unrolled
        gi = gi_ref[t]                              # (bB, 3H) clean vld
        gh = jnp.dot(h, w_hh,
                     preferred_element_type=jnp.float32) + b_hh      # (bB, 3H)
        rz = jax.nn.sigmoid(gi[:, :2 * H] + gh[:, :2 * H])   # fused r,z gates
        r = rz[:, :H]
        zg = rz[:, H:2 * H]
        n = jnp.tanh(gi[:, 2 * H:] + r * gh[:, 2 * H:])
        h = (1.0 - zg) * n + zg * h
        hs.append(h)                                # stays in registers

    # ---- (3) Deferred fc/relu head: one batched matmul, dense stores. -------
    h_flat = jnp.concatenate(hs, axis=0)            # (T*bB, H) time-major
    z_pre = (jnp.dot(h_flat, fc_w_ref[...],
                     preferred_element_type=jnp.float32)
             + fc_b_ref[...])                       # (T*bB, F)
    z_out_ref[...] = jnp.maximum(z_pre, 0.0).reshape(T, bB, F)

    # hn = fc(h_T) + b, NO relu == pre-relu rows for t = T-1 (no extra matmul).
    hn_out_ref[...] = z_pre[(T - 1) * bB:, :]


def encoder_atten_forward(x, params, *, block_b=None):
    """x: (B, T, num_features) float32, batch_first like PyTorch.

    block_b: batch rows per program. Default = B (single program; best on
    1-TC v5e/v6e at small B). On v7x pick ~ceil(B/2) so the "parallel" grid
    axis shards across both TensorCores.
    """
    B, T, F_ = x.shape
    H = params["w_hh"].shape[1]
    if block_b is None:
        block_b = B
    assert B % block_b == 0, "block_b must divide B"
    nb = B // block_b

    x = x.astype(jnp.float32)
    # Time-major, batch-blocked layout: (nb, T, block_b, F).  Wrapper-side
    # transposes are tiny XLA ops; the kernel itself does no transposes.
    x_tm = jnp.transpose(x, (1, 0, 2)).reshape(T, nb, block_b, F_)
    x_tm = jnp.transpose(x_tm, (1, 0, 2, 3))

    w_ih_t = jnp.transpose(params["w_ih"]).astype(jnp.float32)     # (F, 3H)
    w_hh_t = jnp.transpose(params["w_hh"]).astype(jnp.float32)     # (H, 3H)
    b_ih2 = params["b_ih"].reshape(1, 3 * H).astype(jnp.float32)
    b_hh2 = params["b_hh"].reshape(1, 3 * H).astype(jnp.float32)
    fc_w_t = jnp.transpose(params["fc_w"]).astype(jnp.float32)     # (H, F)
    fc_b2 = params["fc_b"].reshape(1, F_).astype(jnp.float32)

    # Advisory cost estimate for XLA scheduling (hn head matmul removed).
    flops = (2 * B * T * F_ * 3 * H      # hoisted input projection
             + 2 * T * B * H * 3 * H     # recurrent h @ W_hh per step
             + 2 * B * T * H * F_)       # deferred fc head
    transcendentals = 3 * T * B * H
    bytes_accessed = 4 * (B * T * F_ + F_ * 3 * H + H * 3 * H + 6 * H
                          + H * F_ + F_ + B * T * F_ + B * F_)

    grid_spec = pltpu.PrefetchScalarGridSpec(
        num_scalar_prefetch=0,
        grid=(nb,),
        in_specs=[
            pl.BlockSpec((pl.Squeezed(), T, block_b, F_),
                         lambda i: (i, 0, 0, 0)),
            pl.BlockSpec((F_, 3 * H), lambda i: (0, 0)),
            pl.BlockSpec((H, 3 * H), lambda i: (0, 0)),
            pl.BlockSpec((1, 3 * H), lambda i: (0, 0)),
            pl.BlockSpec((1, 3 * H), lambda i: (0, 0)),
            pl.BlockSpec((H, F_), lambda i: (0, 0)),
            pl.BlockSpec((1, F_), lambda i: (0, 0)),
        ],
        out_specs=[
            pl.BlockSpec((pl.Squeezed(), T, block_b, F_),
                         lambda i: (i, 0, 0, 0)),
            pl.BlockSpec((pl.Squeezed(), block_b, F_),
                         lambda i: (i, 0, 0)),
        ],
        scratch_shapes=[pltpu.VMEM((T, block_b, 3 * H), jnp.float32)],
    )

    z_tm, hn_b = pl.pallas_call(
        _gru_fc_kernel,
        out_shape=(
            jax.ShapeDtypeStruct((nb, T, block_b, F_), jnp.float32),
            jax.ShapeDtypeStruct((nb, block_b, F_), jnp.float32),
        ),
        grid_spec=grid_spec,
        compiler_params=pltpu.CompilerParams(
            dimension_semantics=("parallel",)),
        cost_estimate=pl.CostEstimate(flops=flops,
                                      transcendentals=transcendentals,
                                      bytes_accessed=bytes_accessed),
    )(x_tm, w_ih_t, w_hh_t, b_ih2, b_hh2, fc_w_t, fc_b2)

    # Back to batch-first (free/tiny wrapper ops).
    z_out = jnp.transpose(z_tm, (0, 2, 1, 3)).reshape(B, T, F_)
    hn_out = hn_b.reshape(B, F_)
    return z_out, hn_out
    # TODO(synk): if the surrounding model allows, stack independent encoders
    # along the feature axis (or pad F to 128) for lane-dense output stores.


# ----------------------------------------------------------------------------
# Pure-JAX reference (for correctness check)
# ----------------------------------------------------------------------------
def encoder_atten_ref(x, params):
    B, T, F_ = x.shape
    H = params["w_hh"].shape[1]
    w_ih, w_hh = params["w_ih"], params["w_hh"]
    b_ih, b_hh = params["b_ih"], params["b_hh"]
    fc_w, fc_b = params["fc_w"], params["fc_b"]

    def cell(h, x_t):
        gi = x_t @ w_ih.T + b_ih
        gh = h @ w_hh.T + b_hh
        r = jax.nn.sigmoid(gi[:, :H] + gh[:, :H])
        zg = jax.nn.sigmoid(gi[:, H:2 * H] + gh[:, H:2 * H])
        n = jnp.tanh(gi[:, 2 * H:] + r * gh[:, 2 * H:])
        h_new = (1.0 - zg) * n + zg * h
        return h_new, h_new

    h0 = jnp.zeros((B, H), jnp.float32)
    hT, hs = lax.scan(cell, h0, jnp.transpose(x, (1, 0, 2)))
    z = jnp.transpose(hs, (1, 0, 2))                               # (B, T, H)
    z = jax.nn.relu(z @ fc_w.T + fc_b)
    hn = hT @ fc_w.T + fc_b
    return z, hn


# ----------------------------------------------------------------------------
# Deterministic parameter init (mirrors shapes from the PyTorch __init__)
# ----------------------------------------------------------------------------
def make_params(num_features, hidden_size, key):
    k1, k2, k3, k4, k5, k6 = jax.random.split(key, 6)
    orth = jax.nn.initializers.orthogonal()
    glorot = jax.nn.initializers.glorot_uniform()
    bound = 1.0 / jnp.sqrt(hidden_size)
    return {
        # GRU: orthogonal for matrices, normal for biases (per init_()).
        "w_ih": orth(k1, (3 * hidden_size, num_features), jnp.float32),
        "w_hh": orth(k2, (3 * hidden_size, hidden_size), jnp.float32),
        "b_ih": jax.random.normal(k3, (3 * hidden_size,), jnp.float32),
        "b_hh": jax.random.normal(k4, (3 * hidden_size,), jnp.float32),
        # fc: xavier_uniform weight, default-torch uniform bias.
        "fc_w": glorot(k5, (num_features, hidden_size), jnp.float32),
        "fc_b": jax.random.uniform(k6, (num_features,), jnp.float32,
                                   minval=-bound, maxval=bound),
    }


if __name__ == "__main__":
    # Small shapes consistent with the module: (batch, seq_len, num_features)
    batch, seq_len, num_features, hidden_size = 2, 8, 4, 32

    key = jax.random.PRNGKey(0)
    k_x, k_p = jax.random.split(key)
    x = jax.random.normal(k_x, (batch, seq_len, num_features), jnp.float32)
    params = make_params(num_features, hidden_size, k_p)

    z_ref, hn_ref = encoder_atten_ref(x, params)

    # Default path: one program with the whole batch (best on 1-TC v5e/v6e).
    z_out, hn_out = encoder_atten_forward(x, params)
    z_out = jax.block_until_ready(z_out)
    hn_out = jax.block_until_ready(hn_out)
    assert z_out.shape == (batch, seq_len, num_features)
    assert hn_out.shape == (batch, num_features)
    assert jnp.allclose(z_out, z_ref, atol=1e-5, rtol=1e-5)
    assert jnp.allclose(hn_out, hn_ref, atol=1e-5, rtol=1e-5)

    # Batch-sharded grid path (what a v7x deployment would use to spread the
    # independent batch rows across its two TensorCores).
    z2, hn2 = encoder_atten_forward(x, params, block_b=1)
    z2 = jax.block_until_ready(z2)
    hn2 = jax.block_until_ready(hn2)
    assert jnp.allclose(z2, z_ref, atol=1e-5, rtol=1e-5)
    assert jnp.allclose(hn2, hn_ref, atol=1e-5, rtol=1e-5)

    print("KERNEL_OK")
</pallas_src>

<mosaic_0001>
module attributes {stable_mosaic.version = 11 : i64} {
  func.func @_gru_fc_kernel(%arg0: i32, %arg1: memref<1x8x2x4xf32, #tpu.memory_space<vmem>>, %arg2: memref<4x96xf32, #tpu.memory_space<vmem>>, %arg3: memref<32x96xf32, #tpu.memory_space<vmem>>, %arg4: memref<1x96xf32, #tpu.memory_space<vmem>>, %arg5: memref<1x96xf32, #tpu.memory_space<vmem>>, %arg6: memref<32x4xf32, #tpu.memory_space<vmem>>, %arg7: memref<1x4xf32, #tpu.memory_space<vmem>>, %arg8: memref<1x8x2x4xf32, #tpu.memory_space<vmem>>, %arg9: memref<1x2x4xf32, #tpu.memory_space<vmem>>, %arg10: memref<8x2x96xf32, #tpu.memory_space<vmem>>) attributes {dimension_semantics = [#tpu.dimension_semantics<parallel>], iteration_bounds = array<i64: 1>, scalar_prefetch = 0 : i64, scratch_operands = 1 : i64, tpu.core_type = #tpu.core_type<tc>, window_params = [{transform_indices = @transform_0, window_bounds = array<i64: 1, 8, 2, 4>}, {pipeline_mode = #tpu.pipeline_mode<synchronous>, transform_indices = @transform_1, window_bounds = array<i64: 4, 96>}, {pipeline_mode = #tpu.pipeline_mode<synchronous>, transform_indices = @transform_2, window_bounds = array<i64: 32, 96>}, {pipeline_mode = #tpu.pipeline_mode<synchronous>, transform_indices = @transform_3, window_bounds = array<i64: 1, 96>}, {pipeline_mode = #tpu.pipeline_mode<synchronous>, transform_indices = @transform_4, window_bounds = array<i64: 1, 96>}, {pipeline_mode = #tpu.pipeline_mode<synchronous>, transform_indices = @transform_5, window_bounds = array<i64: 32, 4>}, {pipeline_mode = #tpu.pipeline_mode<synchronous>, transform_indices = @transform_6, window_bounds = array<i64: 1, 4>}, {transform_indices = @transform_7, window_bounds = array<i64: 1, 8, 2, 4>}, {transform_indices = @transform_8, window_bounds = array<i64: 1, 2, 4>}]} {
    %c0 = arith.constant 0 : index
    %c0_0 = arith.constant 0 : index
    %c0_1 = arith.constant 0 : index
    %c0_2 = arith.constant 0 : index
    %0 = vector.load %arg1[%c0, %c0_0, %c0_1, %c0_2] : memref<1x8x2x4xf32, #tpu.memory_space<vmem>>, vector<1x8x2x4xf32>
    %1 = vector.shape_cast %0 : vector<1x8x2x4xf32> to vector<8x2x4xf32>
    %2 = vector.shape_cast %1 : vector<8x2x4xf32> to vector<16x4xf32>
    %c0_3 = arith.constant 0 : index
    %c0_4 = arith.constant 0 : index
    %3 = vector.load %arg2[%c0_3, %c0_4] : memref<4x96xf32, #tpu.memory_space<vmem>>, vector<4x96xf32>
    %cst = arith.constant dense<0.000000e+00> : vector<16x96xf32>
    %4 = tpu.matmul %2, %3, %cst {dimension_numbers = #tpu.dot_dimension_numbers<[1], [0], [0], [1], [0, 0, 1, 1], [], []>} : vector<16x4xf32>, vector<4x96xf32>, vector<16x96xf32> -> vector<16x96xf32>
    %c0_5 = arith.constant 0 : index
    %c0_6 = arith.constant 0 : index
    %5 = vector.load %arg4[%c0_5, %c0_6] : memref<1x96xf32, #tpu.memory_space<vmem>>, vector<1x96xf32>
    %6 = vector.broadcast %5 : vector<1x96xf32> to vector<16x96xf32>
    %7 = arith.addf %4, %6 : vector<16x96xf32>
    %8 = vector.shape_cast %7 : vector<16x96xf32> to vector<8x2x96xf32>
    %c0_7 = arith.constant 0 : index
    %c0_8 = arith.constant 0 : index
    %c0_9 = arith.constant 0 : index
    %9 = vector.load %arg10[%c0_7, %c0_8, %c0_9] : memref<8x2x96xf32, #tpu.memory_space<vmem>>, vector<8x2x96xf32>
    tpu.vector_store %arg10[%c0_7, %c0_8, %c0_9], %8 {strides = array<i32>} : memref<8x2x96xf32, #tpu.memory_space<vmem>>, vector<8x2x96xf32>,
    %c0_10 = arith.constant 0 : index
    %c0_11 = arith.constant 0 : index
    %10 = vector.load %arg3[%c0_10, %c0_11] : memref<32x96xf32, #tpu.memory_space<vmem>>, vector<32x96xf32>
    %c0_12 = arith.constant 0 : index
    %c0_13 = arith.constant 0 : index
    %11 = vector.load %arg5[%c0_12, %c0_13] : memref<1x96xf32, #tpu.memory_space<vmem>>, vector<1x96xf32>
    %cst_14 = arith.constant 0.000000e+00 : f32
    %12 = vector.broadcast %cst_14 : f32 to vector<2x32xf32>
    %c0_15 = arith.constant 0 : index
    %c0_16 = arith.constant 0 : index
    %c0_17 = arith.constant 0 : index
    %13 = vector.load %arg10[%c0_15, %c0_16, %c0_17] : memref<8x2x96xf32, #tpu.memory_space<vmem>>, vector<1x2x96xf32>
    %14 = vector.shape_cast %13 : vector<1x2x96xf32> to vector<2x96xf32>
    %cst_18 = arith.constant dense<0.000000e+00> : vector<2x96xf32>
    %15 = tpu.matmul %12, %10, %cst_18 {dimension_numbers = #tpu.dot_dimension_numbers<[1], [0], [0], [1], [0, 0, 1, 1], [], []>} : vector<2x32xf32>, vector<32x96xf32>, vector<2x96xf32> -> vector<2x96xf32>
    %16 = vector.broadcast %11 : vector<1x96xf32> to vector<2x96xf32>
    %17 = arith.addf %15, %16 : vector<2x96xf32>
    %18 = vector.extract_strided_slice %14 {offsets = [0, 0], sizes = [2, 64], strides = [1, 1]} : vector<2x96xf32> to vector<2x64xf32>
    %19 = vector.extract_strided_slice %17 {offsets = [0, 0], sizes = [2, 64], strides = [1, 1]} : vector<2x96xf32> to vector<2x64xf32>
    %20 = arith.addf %18, %19 : vector<2x64xf32>
    %21 = arith.negf %20 : vector<2x64xf32>
    %22 = math.exp %21 : vector<2x64xf32>
    %cst_19 = arith.constant 1.000000e+00 : f32
    %23 = vector.broadcast %cst_19 : f32 to vector<2x64xf32>
    %24 = arith.addf %23, %22 : vector<2x64xf32>
    %25 = arith.divf %23, %24 : vector<2x64xf32>
    %26 = vector.extract_strided_slice %25 {offsets = [0, 0], sizes = [2, 32], strides = [1, 1]} : vector<2x64xf32> to vector<2x32xf32>
    %27 = vector.extract_strided_slice %25 {offsets = [0, 32], sizes = [2, 32], strides = [1, 1]} : vector<2x64xf32> to vector<2x32xf32>
    %28 = vector.extract_strided_slice %14 {offsets = [0, 64], sizes = [2, 32], strides = [1, 1]} : vector<2x96xf32> to vector<2x32xf32>
    %29 = vector.extract_strided_slice %17 {offsets = [0, 64], sizes = [2, 32], strides = [1, 1]} : vector<2x96xf32> to vector<2x32xf32>
    %30 = arith.mulf %26, %29 : vector<2x32xf32>
    %31 = arith.addf %28, %30 : vector<2x32xf32>
    %32 = math.tanh %31 : vector<2x32xf32>
    %cst_20 = arith.constant 1.000000e+00 : f32
    %33 = vector.broadcast %cst_20 : f32 to vector<2x32xf32>
    %34 = arith.subf %33, %27 : vector<2x32xf32>
    %35 = arith.mulf %34, %32 : vector<2x32xf32>
    %36 = arith.mulf %27, %12 : vector<2x32xf32>
    %37 = arith.addf %35, %36 : vector<2x32xf32>
    %c1 = arith.constant 1 : index
    %c0_21 = arith.constant 0 : index
    %c0_22 = arith.constant 0 : index
    %38 = vector.load %arg10[%c1, %c0_21, %c0_22] : memref<8x2x96xf32, #tpu.memory_space<vmem>>, vector<1x2x96xf32>
    %39 = vector.shape_cast %38 : vector<1x2x96xf32> to vector<2x96xf32>
    %cst_23 = arith.constant dense<0.000000e+00> : vector<2x96xf32>
    %40 = tpu.matmul %37, %10, %cst_23 {dimension_numbers = #tpu.dot_dimension_numbers<[1], [0], [0], [1], [0, 0, 1, 1], [], []>} : vector<2x32xf32>, vector<32x96xf32>, vector<2x96xf32> -> vector<2x96xf32>
    %41 = vector.broadcast %11 : vector<1x96xf32> to vector<2x96xf32>
    %42 = arith.addf %40, %41 : vector<2x96xf32>
    %43 = vector.extract_strided_slice %39 {offsets = [0, 0], sizes = [2, 64], strides = [1, 1]} : vector<2x96xf32> to vector<2x64xf32>
    %44 = vector.extract_strided_slice %42 {offsets = [0, 0], sizes = [2, 64], strides = [1, 1]} : vector<2x96xf32> to vector<2x64xf32>
    %45 = arith.addf %43, %44 : vector<2x64xf32>
    %46 = arith.negf %45 : vector<2x64xf32>
    %47 = math.exp %46 : vector<2x64xf32>
    %cst_24 = arith.constant 1.000000e+00 : f32
    %48 = vector.broadcast %cst_24 : f32 to vector<2x64xf32>
    %49 = arith.addf %48, %47 : vector<2x64xf32>
    %50 = arith.divf %48, %49 : vector<2x64xf32>
    %51 = vector.extract_strided_slice %50 {offsets = [0, 0], sizes = [2, 32], strides = [1, 1]} : vector<2x64xf32> to vector<2x32xf32>
    %52 = vector.extract_strided_slice %50 {offsets = [0, 32], sizes = [2, 32], strides = [1, 1]} : vector<2x64xf32> to vector<2x32xf32>
    %53 = vector.extract_strided_slice %39 {offsets = [0, 64], sizes = [2, 32], strides = [1, 1]} : vector<2x96xf32> to vector<2x32xf32>
    %54 = vector.extract_strided_slice %42 {offsets = [0, 64], sizes = [2, 32], strides = [1, 1]} : vector<2x96xf32> to vector<2x32xf32>
    %55 = arith.mulf %51, %54 : vector<2x32xf32>
    %56 = arith.addf %53, %55 : vector<2x32xf32>
    %57 = math.tanh %56 : vector<2x32xf32>
    %cst_25 = arith.constant 1.000000e+00 : f32
    %58 = vector.broadcast %cst_25 : f32 to vector<2x32xf32>
    %59 = arith.subf %58, %52 : vector<2x32xf32>
    %60 = arith.mulf %59, %57 : vector<2x32xf32>
    %61 = arith.mulf %52, %37 : vector<2x32xf32>
    %62 = arith.addf %60, %61 : vector<2x32xf32>
    %c2 = arith.constant 2 : index
    %c0_26 = arith.constant 0 : index
    %c0_27 = arith.constant 0 : index
    %63 = vector.load %arg10[%c2, %c0_26, %c0_27] : memref<8x2x96xf32, #tpu.memory_space<vmem>>, vector<1x2x96xf32>
    %64 = vector.shape_cast %63 : vector<1x2x96xf32> to vector<2x96xf32>
    %cst_28 = arith.constant dense<0.000000e+00> : vector<2x96xf32>
    %65 = tpu.matmul %62, %10, %cst_28 {dimension_numbers = #tpu.dot_dimension_numbers<[1], [0], [0], [1], [0, 0, 1, 1], [], []>} : vector<2x32xf32>, vector<32x96xf32>, vector<2x96xf32> -> vector<2x96xf32>
    %66 = vector.broadcast %11 : vector<1x96xf32> to vector<2x96xf32>
    %67 = arith.addf %65, %66 : vector<2x96xf32>
    %68 = vector.extract_strided_slice %64 {offsets = [0, 0], sizes = [2, 64], strides = [1, 1]} : vector<2x96xf32> to vector<2x64xf32>
    %69 = vector.extract_strided_slice %67 {offsets = [0, 0], sizes = [2, 64], strides = [1, 1]} : vector<2x96xf32> to vector<2x64xf32>
    %70 = arith.addf %68, %69 : vector<2x64xf32>
    %71 = arith.negf %70 : vector<2x64xf32>
    %72 = math.exp %71 : vector<2x64xf32>
    %cst_29 = arith.constant 1.000000e+00 : f32
    %73 = vector.broadcast %cst_29 : f32 to vector<2x64xf32>
    %74 = arith.addf %73, %72 : vector<2x64xf32>
    %75 = arith.divf %73, %74 : vector<2x64xf32>
    %76 = vector.extract_strided_slice %75 {offsets = [0, 0], sizes = [2, 32], strides = [1, 1]} : vector<2x64xf32> to vector<2x32xf32>
    %77 = vector.extract_strided_slice %75 {offsets = [0, 32], sizes = [2, 32], strides = [1, 1]} : vector<2x64xf32> to vector<2x32xf32>
    %78 = vector.extract_strided_slice %64 {offsets = [0, 64], sizes = [2, 32], strides = [1, 1]} : vector<2x96xf32> to vector<2x32xf32>
    %79 = vector.extract_strided_slice %67 {offsets = [0, 64], sizes = [2, 32], strides = [1, 1]} : vector<2x96xf32> to vector<2x32xf32>
    %80 = arith.mulf %76, %79 : vector<2x32xf32>
    %81 = arith.addf %78, %80 : vector<2x32xf32>
    %82 = math.tanh %81 : vector<2x32xf32>
    %cst_30 = arith.constant 1.000000e+00 : f32
    %83 = vector.broadcast %cst_30 : f32 to vector<2x32xf32>
    %84 = arith.subf %83, %77 : vector<2x32xf32>
    %85 = arith.mulf %84, %82 : vector<2x32xf32>
    %86 = arith.mulf %77, %62 : vector<2x32xf32>
    %87 = arith.addf %85, %86 : vector<2x32xf32>
    %c3 = arith.constant 3 : index
    %c0_31 = arith.constant 0 : index
    %c0_32 = arith.constant 0 : index
    %88 = vector.load %arg10[%c3, %c0_31, %c0_32] : memref<8x2x96xf32, #tpu.memory_space<vmem>>, vector<1x2x96xf32>
    %89 = vector.shape_cast %88 : vector<1x2x96xf32> to vector<2x96xf32>
    %cst_33 = arith.constant dense<0.000000e+00> : vector<2x96xf32>
    %90 = tpu.matmul %87, %10, %cst_33 {dimension_numbers = #tpu.dot_dimension_numbers<[1], [0], [0], [1], [0, 0, 1, 1], [], []>} : vector<2x32xf32>, vector<32x96xf32>, vector<2x96xf32> -> vector<2x96xf32>
    %91 = vector.broadcast %11 : vector<1x96xf32> to vector<2x96xf32>
    %92 = arith.addf %90, %91 : vector<2x96xf32>
    %93 = vector.extract_strided_slice %89 {offsets = [0, 0], sizes = [2, 64], strides = [1, 1]} : vector<2x96xf32> to vector<2x64xf32>
    %94 = vector.extract_strided_slice %92 {offsets = [0, 0], sizes = [2, 64], strides = [1, 1]} : vector<2x96xf32> to vector<2x64xf32>
    %95 = arith.addf %93, %94 : vector<2x64xf32>
    %96 = arith.negf %95 : vector<2x64xf32>
    %97 = math.exp %96 : vector<2x64xf32>
    %cst_34 = arith.constant 1.000000e+00 : f32
    %98 = vector.broadcast %cst_34 : f32 to vector<2x64xf32>
    %99 = arith.addf %98, %97 : vector<2x64xf32>
    %100 = arith.divf %98, %99 : vector<2x64xf32>
    %101 = vector.extract_strided_slice %100 {offsets = [0, 0], sizes = [2, 32], strides = [1, 1]} : vector<2x64xf32> to vector<2x32xf32>
    %102 = vector.extract_strided_slice %100 {offsets = [0, 32], sizes = [2, 32], strides = [1, 1]} : vector<2x64xf32> to vector<2x32xf32>
    %103 = vector.extract_strided_slice %89 {offsets = [0, 64], sizes = [2, 32], strides = [1, 1]} : vector<2x96xf32> to vector<2x32xf32>
    %104 = vector.extract_strided_slice %92 {offsets = [0, 64], sizes = [2, 32], strides = [1, 1]} : vector<2x96xf32> to vector<2x32xf32>
    %105 = arith.mulf %101, %104 : vector<2x32xf32>
    %106 = arith.addf %103, %105 : vector<2x32xf32>
    %107 = math.tanh %106 : vector<2x32xf32>
    %cst_35 = arith.constant 1.000000e+00 : f32
    %108 = vector.broadcast %cst_35 : f32 to vector<2x32xf32>
    %109 = arith.subf %108, %102 : vector<2x32xf32>
    %110 = arith.mulf %109, %107 : vector<2x32xf32>
    %111 = arith.mulf %102, %87 : vector<2x32xf32>
    %112 = arith.addf %110, %111 : vector<2x32xf32>
    %c4 = arith.constant 4 : index
    %c0_36 = arith.constant 0 : index
    %c0_37 = arith.constant 0 : index
    %113 = vector.load %arg10[%c4, %c0_36, %c0_37] : memref<8x2x96xf32, #tpu.memory_space<vmem>>, vector<1x2x96xf32>
    %114 = vector.shape_cast %113 : vector<1x2x96xf32> to vector<2x96xf32>
    %cst_38 = arith.constant dense<0.000000e+00> : vector<2x96xf32>
    %115 = tpu.matmul %112, %10, %cst_38 {dimension_numbers = #tpu.dot_dimension_numbers<[1], [0], [0], [1], [0, 0, 1, 1], [], []>} : vector<2x32xf32>, vector<32x96xf32>, vector<2x96xf32> -> vector<2x96xf32>
    %116 = vector.broadcast %11 : vector<1x96xf32> to vector<2x96xf32>
    %117 = arith.addf %115, %116 : vector<2x96xf32>
    %118 = vector.extract_strided_slice %114 {offsets = [0, 0], sizes = [2, 64], strides = [1, 1]} : vector<2x96xf32> to vector<2x64xf32>
    %119 = vector.extract_strided_slice %117 {offsets = [0, 0], sizes = [2, 64], strides = [1, 1]} : vector<2x96xf32> to vector<2x64xf32>
    %120 = arith.addf %118, %119 : vector<2x64xf32>
    %121 = arith.negf %120 : vector<2x64xf32>
    %122 = math.exp %121 : vector<2x64xf32>
    %cst_39 = arith.constant 1.000000e+00 : f32
    %123 = vector.broadcast %cst_39 : f32 to vector<2x64xf32>
    %124 = arith.addf %123, %122 : vector<2x64xf32>
    %125 = arith.divf %123, %124 : vector<2x64xf32>
    %126 = vector.extract_strided_slice %125 {offsets = [0, 0], sizes = [2, 32], strides = [1, 1]} : vector<2x64xf32> to vector<2x32xf32>
    %127 = vector.extract_strided_slice %125 {offsets = [0, 32], sizes = [2, 32], strides = [1, 1]} : vector<2x64xf32> to vector<2x32xf32>
    %128 = vector.extract_strided_slice %114 {offsets = [0, 64], sizes = [2, 32], strides = [1, 1]} : vector<2x96xf32> to vector<2x32xf32>
    %129 = vector.extract_strided_slice %117 {offsets = [0, 64], sizes = [2, 32], strides = [1, 1]} : vector<2x96xf32> to vector<2x32xf32>
    %130 = arith.mulf %126, %129 : vector<2x32xf32>
    %131 = arith.addf %128, %130 : vector<2x32xf32>
    %132 = math.tanh %131 : vector<2x32xf32>
    %cst_40 = arith.constant 1.000000e+00 : f32
    %133 = vector.broadcast %cst_40 : f32 to vector<2x32xf32>
    %134 = arith.subf %133, %127 : vector<2x32xf32>
    %135 = arith.mulf %134, %132 : vector<2x32xf32>
    %136 = arith.mulf %127, %112 : vector<2x32xf32>
    %137 = arith.addf %135, %136 : vector<2x32xf32>
    %c5 = arith.constant 5 : index
    %c0_41 = arith.constant 0 : index
    %c0_42 = arith.constant 0 : index
    %138 = vector.load %arg10[%c5, %c0_41, %c0_42] : memref<8x2x96xf32, #tpu.memory_space<vmem>>, vector<1x2x96xf32>
    %139 = vector.shape_cast %138 : vector<1x2x96xf32> to vector<2x96xf32>
    %cst_43 = arith.constant dense<0.000000e+00> : vector<2x96xf32>
    %140 = tpu.matmul %137, %10, %cst_43 {dimension_numbers = #tpu.dot_dimension_numbers<[1], [0], [0], [1], [0, 0, 1, 1], [], []>} : vector<2x32xf32>, vector<32x96xf32>, vector<2x96xf32> -> vector<2x96xf32>
    %141 = vector.broadcast %11 : vector<1x96xf32> to vector<2x96xf32>
    %142 = arith.addf %140, %141 : vector<2x96xf32>
    %143 = vector.extract_strided_slice %139 {offsets = [0, 0], sizes = [2, 64], strides = [1, 1]} : vector<2x96xf32> to vector<2x64xf32>
    %144 = vector.extract_strided_slice %142 {offsets = [0, 0], sizes = [2, 64], strides = [1, 1]} : vector<2x96xf32> to vector<2x64xf32>
    %145 = arith.addf %143, %144 : vector<2x64xf32>
    %146 = arith.negf %145 : vector<2x64xf32>
    %147 = math.exp %146 : vector<2x64xf32>
    %cst_44 = arith.constant 1.000000e+00 : f32
    %148 = vector.broadcast %cst_44 : f32 to vector<2x64xf32>
    %149 = arith.addf %148, %147 : vector<2x64xf32>
    %150 = arith.divf %148, %149 : vector<2x64xf32>
    %151 = vector.extract_strided_slice %150 {offsets = [0, 0], sizes = [2, 32], strides = [1, 1]} : vector<2x64xf32> to vector<2x32xf32>
    %152 = vector.extract_strided_slice %150 {offsets = [0, 32], sizes = [2, 32], strides = [1, 1]} : vector<2x64xf32> to vector<2x32xf32>
    %153 = vector.extract_strided_slice %139 {offsets = [0, 64], sizes = [2, 32], strides = [1, 1]} : vector<2x96xf32> to vector<2x32xf32>
    %154 = vector.extract_strided_slice %142 {offsets = [0, 64], sizes = [2, 32], strides = [1, 1]} : vector<2x96xf32> to vector<2x32xf32>
    %155 = arith.mulf %151, %154 : vector<2x32xf32>
    %156 = arith.addf %153, %155 : vector<2x32xf32>
    %157 = math.tanh %156 : vector<2x32xf32>
    %cst_45 = arith.constant 1.000000e+00 : f32
    %158 = vector.broadcast %cst_45 : f32 to vector<2x32xf32>
    %159 = arith.subf %158, %152 : vector<2x32xf32>
    %160 = arith.mulf %159, %157 : vector<2x32xf32>
    %161 = arith.mulf %152, %137 : vector<2x32xf32>
    %162 = arith.addf %160, %161 : vector<2x32xf32>
    %c6 = arith.constant 6 : index
    %c0_46 = arith.constant 0 : index
    %c0_47 = arith.constant 0 : index
    %163 = vector.load %arg10[%c6, %c0_46, %c0_47] : memref<8x2x96xf32, #tpu.memory_space<vmem>>, vector<1x2x96xf32>
    %164 = vector.shape_cast %163 : vector<1x2x96xf32> to vector<2x96xf32>
    %cst_48 = arith.constant dense<0.000000e+00> : vector<2x96xf32>
    %165 = tpu.matmul %162, %10, %cst_48 {dimension_numbers = #tpu.dot_dimension_numbers<[1], [0], [0], [1], [0, 0, 1, 1], [], []>} : vector<2x32xf32>, vector<32x96xf32>, vector<2x96xf32> -> vector<2x96xf32>
    %166 = vector.broadcast %11 : vector<1x96xf32> to vector<2x96xf32>
    %167 = arith.addf %165, %166 : vector<2x96xf32>
    %168 = vector.extract_strided_slice %164 {offsets = [0, 0], sizes = [2, 64], strides = [1, 1]} : vector<2x96xf32> to vector<2x64xf32>
    %169 = vector.extract_strided_slice %167 {offsets = [0, 0], sizes = [2, 64], strides = [1, 1]} : vector<2x96xf32> to vector<2x64xf32>
    %170 = arith.addf %168, %169 : vector<2x64xf32>
    %171 = arith.negf %170 : vector<2x64xf32>
    %172 = math.exp %171 : vector<2x64xf32>
    %cst_49 = arith.constant 1.000000e+00 : f32
    %173 = vector.broadcast %cst_49 : f32 to vector<2x64xf32>
    %174 = arith.addf %173, %172 : vector<2x64xf32>
    %175 = arith.divf %173, %174 : vector<2x64xf32>
    %176 = vector.extract_strided_slice %175 {offsets = [0, 0], sizes = [2, 32], strides = [1, 1]} : vector<2x64xf32> to vector<2x32xf32>
    %177 = vector.extract_strided_slice %175 {offsets = [0, 32], sizes = [2, 32], strides = [1, 1]} : vector<2x64xf32> to vector<2x32xf32>
    %178 = vector.extract_strided_slice %164 {offsets = [0, 64], sizes = [2, 32], strides = [1, 1]} : vector<2x96xf32> to vector<2x32xf32>
    %179 = vector.extract_strided_slice %167 {offsets = [0, 64], sizes = [2, 32], strides = [1, 1]} : vector<2x96xf32> to vector<2x32xf32>
    %180 = arith.mulf %176, %179 : vector<2x32xf32>
    %181 = arith.addf %178, %180 : vector<2x32xf32>
    %182 = math.tanh %181 : vector<2x32xf32>
    %cst_50 = arith.constant 1.000000e+00 : f32
    %183 = vector.broadcast %cst_50 : f32 to vector<2x32xf32>
    %184 = arith.subf %183, %177 : vector<2x32xf32>
    %185 = arith.mulf %184, %182 : vector<2x32xf32>
    %186 = arith.mulf %177, %162 : vector<2x32xf32>
    %187 = arith.addf %185, %186 : vector<2x32xf32>
    %c7 = arith.constant 7 : index
    %c0_51 = arith.constant 0 : index
    %c0_52 = arith.constant 0 : index
    %188 = vector.load %arg10[%c7, %c0_51, %c0_52] : memref<8x2x96xf32, #tpu.memory_space<vmem>>, vector<1x2x96xf32>
    %189 = vector.shape_cast %188 : vector<1x2x96xf32> to vector<2x96xf32>
    %cst_53 = arith.constant dense<0.000000e+00> : vector<2x96xf32>
    %190 = tpu.matmul %187, %10, %cst_53 {dimension_numbers = #tpu.dot_dimension_numbers<[1], [0], [0], [1], [0, 0, 1, 1], [], []>} : vector<2x32xf32>, vector<32x96xf32>, vector<2x96xf32> -> vector<2x96xf32>
    %191 = vector.broadcast %11 : vector<1x96xf32> to vector<2x96xf32>
    %192 = arith.addf %190, %191 : vector<2x96xf32>
    %193 = vector.extract_strided_slice %189 {offsets = [0, 0], sizes = [2, 64], strides = [1, 1]} : vector<2x96xf32> to vector<2x64xf32>
    %194 = vector.extract_strided_slice %192 {offsets = [0, 0], sizes = [2, 64], strides = [1, 1]} : vector<2x96xf32> to vector<2x64xf32>
    %195 = arith.addf %193, %194 : vector<2x64xf32>
    %196 = arith.negf %195 : vector<2x64xf32>
    %197 = math.exp %196 : vector<2x64xf32>
    %cst_54 = arith.constant 1.000000e+00 : f32
    %198 = vector.broadcast %cst_54 : f32 to vector<2x64xf32>
    %199 = arith.addf %198, %197 : vector<2x64xf32>
    %200 = arith.divf %198, %199 : vector<2x64xf32>
    %201 = vector.extract_strided_slice %200 {offsets = [0, 0], sizes = [2, 32], strides = [1, 1]} : vector<2x64xf32> to vector<2x32xf32>
    %202 = vector.extract_strided_slice %200 {offsets = [0, 32], sizes = [2, 32], strides = [1, 1]} : vector<2x64xf32> to vector<2x32xf32>
    %203 = vector.extract_strided_slice %189 {offsets = [0, 64], sizes = [2, 32], strides = [1, 1]} : vector<2x96xf32> to vector<2x32xf32>
    %204 = vector.extract_strided_slice %192 {offsets = [0, 64], sizes = [2, 32], strides = [1, 1]} : vector<2x96xf32> to vector<2x32xf32>
    %205 = arith.mulf %201, %204 : vector<2x32xf32>
    %206 = arith.addf %203, %205 : vector<2x32xf32>
    %207 = math.tanh %206 : vector<2x32xf32>
    %cst_55 = arith.constant 1.000000e+00 : f32
    %208 = vector.broadcast %cst_55 : f32 to vector<2x32xf32>
    %209 = arith.subf %208, %202 : vector<2x32xf32>
    %210 = arith.mulf %209, %207 : vector<2x32xf32>
    %211 = arith.mulf %202, %187 : vector<2x32xf32>
    %212 = arith.addf %210, %211 : vector<2x32xf32>
    %213 = tpu.concatenate %37, %62, %87, %112, %137, %162, %187, %212 in 0 : vector<2x32xf32>, vector<2x32xf32>, vector<2x32xf32>, vector<2x32xf32>, vector<2x32xf32>, vector<2x32xf32>, vector<2x32xf32>, vector<2x32xf32> -> vector<16x32xf32>
    %c0_56 = arith.constant 0 : index
    %c0_57 = arith.constant 0 : index
    %214 = vector.load %arg6[%c0_56, %c0_57] : memref<32x4xf32, #tpu.memory_space<vmem>>, vector<32x4xf32>
    %cst_58 = arith.constant dense<0.000000e+00> : vector<16x4xf32>
    %215 = tpu.matmul %213, %214, %cst_58 {dimension_numbers = #tpu.dot_dimension_numbers<[1], [0], [0], [1], [0, 0, 1, 1], [], []>} : vector<16x32xf32>, vector<32x4xf32>, vector<16x4xf32> -> vector<16x4xf32>
    %c0_59 = arith.constant 0 : index
    %c0_60 = arith.constant 0 : index
    %216 = vector.load %arg7[%c0_59, %c0_60] : memref<1x4xf32, #tpu.memory_space<vmem>>, vector<1x4xf32>
    %217 = vector.broadcast %216 : vector<1x4xf32> to vector<16x4xf32>
    %218 = arith.addf %215, %217 : vector<16x4xf32>
    %cst_61 = arith.constant 0.000000e+00 : f32
    %219 = vector.broadcast %cst_61 : f32 to vector<16x4xf32>
    %220 = arith.maximumf %218, %219 : vector<16x4xf32>
    %221 = vector.shape_cast %220 : vector<16x4xf32> to vector<8x2x4xf32>
    %c0_62 = arith.constant 0 : index
    %c0_63 = arith.constant 0 : index
    %c0_64 = arith.constant 0 : index
    %c0_65 = arith.constant 0 : index
    %222 = vector.load %arg8[%c0_62, %c0_63, %c0_64, %c0_65] : memref<1x8x2x4xf32, #tpu.memory_space<vmem>>, vector<1x8x2x4xf32>
    %223 = vector.shape_cast %222 : vector<1x8x2x4xf32> to vector<8x2x4xf32>
    %224 = vector.shape_cast %221 : vector<8x2x4xf32> to vector<1x8x2x4xf32>
    tpu.vector_store %arg8[%c0_62, %c0_63, %c0_64, %c0_65], %224 {strides = array<i32>} : memref<1x8x2x4xf32, #tpu.memory_space<vmem>>, vector<1x8x2x4xf32>,
    %225 = vector.extract_strided_slice %218 {offsets = [14, 0], sizes = [2, 4], strides = [1, 1]} : vector<16x4xf32> to vector<2x4xf32>
    %c0_66 = arith.constant 0 : index
    %c0_67 = arith.constant 0 : index
    %c0_68 = arith.constant 0 : index
    %226 = vector.load %arg9[%c0_66, %c0_67, %c0_68] : memref<1x2x4xf32, #tpu.memory_space<vmem>>, vector<1x2x4xf32>
    %227 = vector.shape_cast %226 : vector<1x2x4xf32> to vector<2x4xf32>
    %228 = vector.shape_cast %225 : vector<2x4xf32> to vector<1x2x4xf32>
    tpu.vector_store %arg9[%c0_66, %c0_67, %c0_68], %228 {strides = array<i32>} : memref<1x2x4xf32, #tpu.memory_space<vmem>>, vector<1x2x4xf32>,
    return
  }
  func.func @transform_0(%arg0: i32) -> (i32, i32, i32, i32) {
    %c0_i32 = arith.constant 0 : i32
    %c0_i32_0 = arith.constant 0 : i32
    %c0_i32_1 = arith.constant 0 : i32
    %c0_i32_2 = arith.constant 0 : i32
    return %arg0, %c0_i32, %c0_i32_0, %c0_i32_1 : i32, i32, i32, i32
  }
  func.func @transform_1(%arg0: i32) -> (i32, i32) {
    %c0_i32 = arith.constant 0 : i32
    %c0_i32_0 = arith.constant 0 : i32
    %c0_i32_1 = arith.constant 0 : i32
    return %c0_i32, %c0_i32_0 : i32, i32
  }
  func.func @transform_2(%arg0: i32) -> (i32, i32) {
    %c0_i32 = arith.constant 0 : i32
    %c0_i32_0 = arith.constant 0 : i32
    %c0_i32_1 = arith.constant 0 : i32
    return %c0_i32, %c0_i32_0 : i32, i32
  }
  func.func @transform_3(%arg0: i32) -> (i32, i32) {
    %c0_i32 = arith.constant 0 : i32
    %c0_i32_0 = arith.constant 0 : i32
    %c0_i32_1 = arith.constant 0 : i32
    return %c0_i32, %c0_i32_0 : i32, i32
  }
  func.func @transform_4(%arg0: i32) -> (i32, i32) {
    %c0_i32 = arith.constant 0 : i32
    %c0_i32_0 = arith.constant 0 : i32
    %c0_i32_1 = arith.constant 0 : i32
    return %c0_i32, %c0_i32_0 : i32, i32
  }
  func.func @transform_5(%arg0: i32) -> (i32, i32) {
    %c0_i32 = arith.constant 0 : i32
    %c0_i32_0 = arith.constant 0 : i32
    %c0_i32_1 = arith.constant 0 : i32
    return %c0_i32, %c0_i32_0 : i32, i32
  }
  func.func @transform_6(%arg0: i32) -> (i32, i32) {
    %c0_i32 = arith.constant 0 : i32
    %c0_i32_0 = arith.constant 0 : i32
    %c0_i32_1 = arith.constant 0 : i32
    return %c0_i32, %c0_i32_0 : i32, i32
  }
  func.func @transform_7(%arg0: i32) -> (i32, i32, i32, i32) {
    %c0_i32 = arith.constant 0 : i32
    %c0_i32_0 = arith.constant 0 : i32
    %c0_i32_1 = arith.constant 0 : i32
    %c0_i32_2 = arith.constant 0 : i32
    return %arg0, %c0_i32, %c0_i32_0, %c0_i32_1 : i32, i32, i32, i32
  }
  func.func @transform_8(%arg0: i32) -> (i32, i32, i32) {
    %c0_i32 = arith.constant 0 : i32
    %c0_i32_0 = arith.constant 0 : i32
    %c0_i32_1 = arith.constant 0 : i32
    return %arg0, %c0_i32, %c0_i32_0 : i32, i32, i32
  }
}

</mosaic_0001>

<llo_original>
// kernel: tpu_custom_call.1
$region0: #{tpu_custom_call.1}
  #allocation0 [shape = 'u32[]', space=smem, size = 0x4, offset = 0x4, fixed_abs, tag = 'smem constant byte address 0x4 - core index']
  #allocation1 [shape = 'u32[144,128]{1,0:T(1,128)}', space=vmem, size = 0x12000, scoped, tag = 'internal scratch']
  #allocation2 [shape = 'f32[8,2,96]{2,1,0:T(2,128)}', space=vmem, size = 0x2000, scoped, tag = 'scratch operand']
  %s0 = inlined_call_operand.vmem [shape: f32[1,8,2,4], index: 0, kind: input, shape index: {}]
  %s1 = inlined_call_operand.vmem [shape: f32[4,96], index: 1, kind: input, shape index: {}]
  %s2 = inlined_call_operand.vmem [shape: f32[32,96], index: 2, kind: input, shape index: {}]
  %s3 = inlined_call_operand.vmem [shape: f32[1,96], index: 3, kind: input, shape index: {}]
  %s4 = inlined_call_operand.vmem [shape: f32[1,96], index: 4, kind: input, shape index: {}]
  %s5 = inlined_call_operand.vmem [shape: f32[32,4], index: 5, kind: input, shape index: {}]
  %s6 = inlined_call_operand.vmem [shape: f32[1,4], index: 6, kind: input, shape index: {}]
  %s7 = inlined_call_operand.vmem [shape: f32[1,8,2,4], index: 7, kind: output, shape index: {0}]
  %s8 = inlined_call_operand.hbm [shape: f32[1,2,4], index: 8, kind: output, shape index: {1}]
  %9 = xla_tuple %s7, %s8
  %s10 = sld [smem:[#allocation0]]
  $region46: #{tpu_custom_call.1} parent=0
    _
  %s12 = ssub.s32 1, %s10
  %s13 = scalar_select 0, %s12, %s10
  $region1: #{tpu_custom_call.1} parent=0
    #allocation3 [shape = 'u8[1024]{0}', space=vmem, size = 0x400, scoped, tag = 'output window, operand 1, single buffered']
    #allocation4 [shape = 's32[1]{0}', space=sflag, size = 0x4, scoped, tag = 'scoped memory for tpu_custom_call.1']
    %14 = vsyncpa [#allocation4], 0
    // Predicated region
    $region2: #{tpu_custom_call.1} parent=1 // pred_check
      _
    $region3: #{tpu_custom_call.1} parent=1 // pred_check_branch
      %16 = sbr.rel (0) target = $region5
    $region4: #{tpu_custom_call.1} parent=1 // pred_region
      _
    $region5: #{tpu_custom_call.1} parent=1 // pred_fallthru
      _
    // Predicated region
    $region6: #{tpu_custom_call.1} parent=1 // pred_check
      _
    $region7: #{tpu_custom_call.1} parent=1 // pred_check_branch
      %18 = sbr.rel (0) target = $region9
    $region8: #{tpu_custom_call.1} parent=1 // pred_region
      _
    $region9: #{tpu_custom_call.1} parent=1 // pred_fallthru
      _
    // Predicated region
    $region10: #{tpu_custom_call.1} parent=1 // pred_check
      _
    $region11: #{tpu_custom_call.1} parent=1 // pred_check_branch
      %20 = sbr.rel (0) target = $region13
    $region12: #{tpu_custom_call.1} parent=1 // pred_region
      _
    $region13: #{tpu_custom_call.1} parent=1 // pred_fallthru
      _
    // Predicated region
    $region14: #{tpu_custom_call.1} parent=1 // pred_check
      _
    $region15: #{tpu_custom_call.1} parent=1 // pred_check_branch
      %22 = sbr.rel (0) target = $region17
    $region16: #{tpu_custom_call.1} parent=1 // pred_region
      _
    $region17: #{tpu_custom_call.1} parent=1 // pred_fallthru
      _
    // Predicated region
    $region18: #{tpu_custom_call.1} parent=1 // pred_check
      _
    $region19: #{tpu_custom_call.1} parent=1 // pred_check_branch
      %24 = sbr.rel (0) target = $region21
    $region20: #{tpu_custom_call.1} parent=1 // pred_region
      _
    $region21: #{tpu_custom_call.1} parent=1 // pred_fallthru
      _
    // Predicated region
    $region22: #{tpu_custom_call.1} parent=1 // pred_check
      _
    $region23: #{tpu_custom_call.1} parent=1 // pred_check_branch
      %26 = sbr.rel (0) target = $region25
    $region24: #{tpu_custom_call.1} parent=1 // pred_region
      _
    $region25: #{tpu_custom_call.1} parent=1 // pred_fallthru
      _
    // Predicated region
    $region26: #{tpu_custom_call.1} parent=1 // pred_check
      _
    $region27: #{tpu_custom_call.1} parent=1 // pred_check_branch
      %28 = sbr.rel (0) target = $region29
    $region28: #{tpu_custom_call.1} parent=1 // pred_region
      _
    $region29: #{tpu_custom_call.1} parent=1 // pred_fallthru
      _
    %v29 = vld [vmem:[%s0] sm:$0x3]
    %v30 = vld [vmem:[%s0 + $0x2] sm:$0x3]
    %v31 = vld [vmem:[%s0 + $0x4] sm:$0x3]
    %v32 = vld [vmem:[%s0 + $0x6] sm:$0x3]
    %v33 = vld [vmem:[%s0 + $0x8] sm:$0x3]
    %v34 = vld [vmem:[%s0 + $0xa] sm:$0x3]
    %v35 = vld [vmem:[%s0 + $0xc] sm:$0x3]
    %v36 = vld [vmem:[%s0 + $0xe] sm:$0x3]
    %v37 = vld [vmem:[%s1] sm:$0xf]
    %v38 = vld [vmem:[%s3] sm:$0x1]
    %v40 = vlaneseq
    %v41 = vshrl.u32 %v40, 7
    %v42 = vsub.s32 0, %v41
    %v43 = vrot.slane %v38, %v42
    %v53 = vcombine.low %v29, %v30
    %v54 = vcombine.low %v31, %v32
    %v56 = vunpack.c.l.s4 1983009808
    %v57 = vunpack.c.0.s8 %v56
    %v58 = vlaneseq
    %v59 = vshrl.u32 %v58, 7
    %v60 = vsub.s32 %v57, %v59
    %v61 = vrot.slane %v53, %v60
    %v63 = vunpack.c.l.s4 1983009808
    %v64 = vunpack.c.0.s8 %v63
    %v65 = vlaneseq
    %v66 = vshrl.u32 %v65, 7
    %v67 = vsub.s32 %v64, %v66
    %v68 = vrot.slane %v54, %v67
    %v69 = vcombine.low %v61, %v68
    %v70 = vcombine.low %v33, %v34
    %v71 = vcombine.low %v35, %v36
    %v73 = vunpack.c.l.s4 1983009808
    %v74 = vunpack.c.0.s8 %v73
    %v75 = vlaneseq
    %v76 = vshrl.u32 %v75, 7
    %v77 = vsub.s32 %v74, %v76
    %v78 = vrot.slane %v70, %v77
    %v80 = vunpack.c.l.s4 1983009808
    %v81 = vunpack.c.0.s8 %v80
    %v82 = vlaneseq
    %v83 = vshrl.u32 %v82, 7
    %v84 = vsub.s32 %v81, %v83
    %v85 = vrot.slane %v71, %v84
    %v86 = vcombine.low %v78, %v85
    %vm87 = vcmask 31744
    %v88 = vsel %vm87, %v69, 0
    %v90 = vsel %vm87, %v86, 0
    %vm92 = vcmask 1043456
    %v94 = vsel %vm92, %v37, 0
    %96 = vmatprep.subr.mxu0 0.0
    %97 = vmatpush1.msra.mxu0 %v94
    %98 = vmatprep.subr.mxu0 0.0
    %99 = vmatpush1.msra.mxu0 0.0
    %100 = vmatprep.subr.mxu0 0.0
    %101 = vmatpush1.msra.mxu0 0.0
    %102 = vmatprep.subr.mxu0 0.0
    %103 = vmatpush1.msra.mxu0 0.0
    %104 = vmatprep.subr.mxu0 0.0
    %105 = vmatpush1.msra.mxu0 0.0
    %106 = vmatprep.subr.mxu0 0.0
    %107 = vmatpush1.msra.mxu0 0.0
    %108 = vmatprep.subr.mxu0 0.0
    %109 = vmatpush1.msra.mxu0 0.0
    %110 = vmatprep.subr.mxu0 0.0
    %111 = vmatpush1.msra.mxu0 0.0
    %112 = vmatprep.subr.mxu0 0.0
    %113 = vmatpush1.msra.mxu0 0.0
    %114 = vmatprep.subr.mxu0 0.0
    %115 = vmatpush1.msra.mxu0 0.0
    %116 = vmatprep.subr.mxu0 0.0
    %117 = vmatpush1.msra.mxu0 0.0
    %118 = vmatprep.subr.mxu0 0.0
    %119 = vmatpush1.msra.mxu0 0.0
    %120 = vmatprep.subr.mxu0 0.0
    %121 = vmatpush1.msra.mxu0 0.0
    %122 = vmatprep.subr.mxu0 0.0
    %123 = vmatpush1.msra.mxu0 0.0
    %124 = vmatprep.subr.mxu0 0.0
    %125 = vmatpush1.msra.mxu0 0.0
    %126 = vmatprep.subr.mxu0 0.0
    %127 = vmatpush1.msra.mxu0 0.0
    %128 = vmatprep.subr.mxu0 0.0
    %129 = vmatpush1.msra.mxu0 0.0
    %130 = vmatprep.subr.mxu0 0.0
    %131 = vmatpush1.msra.mxu0 0.0
    %132 = vmatprep.subr.mxu0 0.0
    %133 = vmatpush1.msra.mxu0 0.0
    %134 = vmatprep.subr.mxu0 0.0
    %135 = vmatpush1.msra.mxu0 0.0
    %136 = vmatprep.subr.mxu0 0.0
    %137 = vmatpush1.msra.mxu0 0.0
    %138 = vmatprep.subr.mxu0 0.0
    %139 = vmatpush1.msra.mxu0 0.0
    %140 = vmatprep.subr.mxu0 0.0
    %141 = vmatpush1.msra.mxu0 0.0
    %142 = vmatprep.subr.mxu0 0.0
    %143 = vmatpush1.msra.mxu0 0.0
    %144 = vmatprep.subr.mxu0 0.0
    %145 = vmatpush1.msra.mxu0 0.0
    %146 = vmatprep.subr.mxu0 0.0
    %147 = vmatpush1.msra.mxu0 0.0
    %148 = vmatprep.subr.mxu0 0.0
    %149 = vmatpush1.msra.mxu0 0.0
    %150 = vmatprep.subr.mxu0 0.0
    %151 = vmatpush1.msra.mxu0 0.0
    %152 = vmatprep.subr.mxu0 0.0
    %153 = vmatpush1.msra.mxu0 0.0
    %154 = vmatprep.subr.mxu0 0.0
    %155 = vmatpush1.msra.mxu0 0.0
    %156 = vmatprep.subr.mxu0 0.0
    %157 = vmatpush1.msra.mxu0 0.0
    %158 = vmatprep.subr.mxu0 0.0
    %159 = vmatpush1.msra.mxu0 0.0
    %160 = vmatprep.mubr.f32.mxu0 0.0
    %161 = vmatmul.mubr.f32.gmra.mrb[0].mxu0 %v88
    %v162 = vpop.f32.mrb[0].mxu0
    %v163 = vadd.f32 %v43, %v162
    %v164 = vpop.f32.mrb[0].mxu0
    %165 = vmatprep.mubr.f32.mxu0 0.0
    %166 = vmatmul.mubr.f32.gmra.mrb[0].mxu0 %v90
    %v167 = vpop.f32.mrb[0].mxu0
    %v168 = vadd.f32 %v43, %v167
    %v169 = vpop.f32.mrb[0].mxu0
    %170 = vdwg.mxu0
    %v173 = vcombine.high %v163, %v163
    %v175 = vunpack.c.l.s4 1983009808
    %v176 = vunpack.c.0.s8 %v175
    %v177 = vlaneseq
    %v178 = vshrl.u32 %v177, 7
    %v179 = vsub.s32 %v176, %v178
    %v180 = vrot.slane %v163, %v179
    %v182 = vunpack.c.l.s4 1983009808
    %v183 = vunpack.c.0.s8 %v182
    %v184 = vlaneseq
    %v185 = vshrl.u32 %v184, 7
    %v186 = vsub.s32 %v183, %v185
    %v187 = vrot.slane %v173, %v186
    %v188 = vcombine.high %v180, %v180
    %v189 = vcombine.high %v187, %v187
    %v190 = vcombine.high %v168, %v168
    %v192 = vunpack.c.l.s4 1983009808
    %v193 = vunpack.c.0.s8 %v192
    %v194 = vlaneseq
    %v195 = vshrl.u32 %v194, 7
    %v196 = vsub.s32 %v193, %v195
    %v197 = vrot.slane %v168, %v196
    %v199 = vunpack.c.l.s4 1983009808
    %v200 = vunpack.c.0.s8 %v199
    %v201 = vlaneseq
    %v202 = vshrl.u32 %v201, 7
    %v203 = vsub.s32 %v200, %v202
    %v204 = vrot.slane %v190, %v203
    %v205 = vcombine.high %v197, %v197
    %v206 = vcombine.high %v204, %v204
    %vm215 = vcmask 779264
    %216 = vst.msk [vmem:[#allocation2] sm:$0x3] %vm215, %v180
    %217 = vst.msk [vmem:[#allocation2 + $0x2] sm:$0x3] %vm215, %v188
    %218 = vst.msk [vmem:[#allocation2 + $0x4] sm:$0x3] %vm215, %v187
    %219 = vst.msk [vmem:[#allocation2 + $0x6] sm:$0x3] %vm215, %v189
    %220 = vst.msk [vmem:[#allocation2 + $0x8] sm:$0x3] %vm215, %v197
    %221 = vst.msk [vmem:[#allocation2 + $0xa] sm:$0x3] %vm215, %v205
    %222 = vst.msk [vmem:[#allocation2 + $0xc] sm:$0x3] %vm215, %v204
    %223 = vst.msk [vmem:[#allocation2 + $0xe] sm:$0x3] %vm215, %v206
    %v224 = vld [vmem:[%s2] sm:$0xff]
    %v225 = vld [vmem:[%s2 + $0x8] sm:$0xff]
    %v226 = vld [vmem:[%s2 + $0x10] sm:$0xff]
    %v227 = vld [vmem:[%s2 + $0x18] sm:$0xff]
    %v228 = vld [vmem:[%s4] sm:$0x1]
    %v229 = vld [vmem:[#allocation2] sm:$0x3]
    %v231 = vlaneseq
    %v232 = vshrl.u32 %v231, 7
    %v233 = vsub.s32 0, %v232
    %v234 = vrot.slane %v228, %v233
    %vm236 = vcmask 261120
    %v238 = vsel %vm236, 0.0, 0
    %240 = vmatprep.subr.mxu0 0.0
    %241 = vmatpush1.msra.mxu0 %v224
    %242 = vmatprep.subr.mxu0 0.0
    %243 = vmatpush1.msra.mxu0 %v225
    %244 = vmatprep.subr.mxu0 0.0
    %245 = vmatpush1.msra.mxu0 %v226
    %246 = vmatprep.subr.mxu0 0.0
    %247 = vmatpush1.msra.mxu0 %v227
    %248 = vmatprep.subr.mxu0 0.0
    %249 = vmatpush1.msra.mxu0 0.0
    %250 = vmatprep.subr.mxu0 0.0
    %251 = vmatpush1.msra.mxu0 0.0
    %252 = vmatprep.subr.mxu0 0.0
    %253 = vmatpush1.msra.mxu0 0.0
    %254 = vmatprep.subr.mxu0 0.0
    %255 = vmatpush1.msra.mxu0 0.0
    %256 = vmatprep.subr.mxu0 0.0
    %257 = vmatpush1.msra.mxu0 0.0
    %258 = vmatprep.subr.mxu0 0.0
    %259 = vmatpush1.msra.mxu0 0.0
    %260 = vmatprep.subr.mxu0 0.0
    %261 = vmatpush1.msra.mxu0 0.0
    %262 = vmatprep.subr.mxu0 0.0
    %263 = vmatpush1.msra.mxu0 0.0
    %264 = vmatprep.subr.mxu0 0.0
    %265 = vmatpush1.msra.mxu0 0.0
    %266 = vmatprep.subr.mxu0 0.0
    %267 = vmatpush1.msra.mxu0 0.0
    %268 = vmatprep.subr.mxu0 0.0
    %269 = vmatpush1.msra.mxu0 0.0
    %270 = vmatprep.subr.mxu0 0.0
    %271 = vmatpush1.msra.mxu0 0.0
    %272 = vmatprep.subr.mxu0 0.0
    %273 = vmatpush1.msra.mxu0 0.0
    %274 = vmatprep.subr.mxu0 0.0
    %275 = vmatpush1.msra.mxu0 0.0
    %276 = vmatprep.subr.mxu0 0.0
    %277 = vmatpush1.msra.mxu0 0.0
    %278 = vmatprep.subr.mxu0 0.0
    %279 = vmatpush1.msra.mxu0 0.0
    %280 = vmatprep.subr.mxu0 0.0
    %281 = vmatpush1.msra.mxu0 0.0
    %282 = vmatprep.subr.mxu0 0.0
    %283 = vmatpush1.msra.mxu0 0.0
    %284 = vmatprep.subr.mxu0 0.0
    %285 = vmatpush1.msra.mxu0 0.0
    %286 = vmatprep.subr.mxu0 0.0
    %287 = vmatpush1.msra.mxu0 0.0
    %288 = vmatprep.subr.mxu0 0.0
    %289 = vmatpush1.msra.mxu0 0.0
    %290 = vmatprep.subr.mxu0 0.0
    %291 = vmatpush1.msra.mxu0 0.0
    %292 = vmatprep.subr.mxu0 0.0
    %293 = vmatpush1.msra.mxu0 0.0
    %294 = vmatprep.subr.mxu0 0.0
    %295 = vmatpush1.msra.mxu0 0.0
    %296 = vmatprep.subr.mxu0 0.0
    %297 = vmatpush1.msra.mxu0 0.0
    %298 = vmatprep.subr.mxu0 0.0
    %299 = vmatpush1.msra.mxu0 0.0
    %300 = vmatprep.subr.mxu0 0.0
    %301 = vmatpush1.msra.mxu0 0.0
    %302 = vmatprep.subr.mxu0 0.0
    %303 = vmatpush1.msra.mxu0 0.0
    %304 = vmatprep.mubr.f32.mxu0 0.0
    %305 = vmatmul.mubr.f32.gmra.mrb[0].mxu0 %v238
    %v306 = vpop.f32.mrb[0].mxu0
    %v307 = vadd.f32 %v234, %v306
    %v308 = vpop.f32.mrb[0].mxu0
    %309 = vdwg.mxu0
    %v310 = vadd.f32 %v229, %v307
    %v311 = vxor.u32 %v310, 2147483648
    %v312 = vmul.f32 %v311, 1.442695
    %v313 = vpow.pop %v312
    %v314 = vadd.f32 %v313, 1.0
    %v315 = vrcp.pop %v314
    %v316 = vmul.f32 1.0, %v315
    %318 = vrot.lane.b32.xlu0 %v307, 64
    %v319 = vpop.permute.xlu0 %318
    %v321 = vmul.f32 %v316, %v319
    %323 = vrot.lane.b32.xlu0 %v321, 64
    %v324 = vpop.permute.xlu0 %323
    %v326 = vadd.f32 %v229, %v324
    %v327 = vtanh.pop %v326
    %v328 = vsub.f32 1.0, %v316
    %330 = vrot.lane.b32.xlu0 %v327, 96
    %v331 = vpop.permute.xlu0 %330
    %v333 = vmul.f32 %v328, %v331
    %v334 = vmul.f32 %v316, 0.0
    %v335 = vadd.f32 %v333, %v334
    %s336 = scalar_lea.vmem [#allocation2], 2
    %v337 = vld [vmem:[%s336] sm:$0x3]
    %339 = vrot.lane.b32.xlu0 %v335, 96
    %v340 = vpop.permute.xlu0 %339
    %v341 = vsel %vm236, %v340, 0
    %343 = vmatprep.subr.mxu0 0.0
    %344 = vmatpush1.msra.mxu0 %v224
    %345 = vmatprep.subr.mxu0 0.0
    %346 = vmatpush1.msra.mxu0 %v225
    %347 = vmatprep.subr.mxu0 0.0
    %348 = vmatpush1.msra.mxu0 %v226
    %349 = vmatprep.subr.mxu0 0.0
    %350 = vmatpush1.msra.mxu0 %v227
    %351 = vmatprep.subr.mxu0 0.0
    %352 = vmatpush1.msra.mxu0 0.0
    %353 = vmatprep.subr.mxu0 0.0
    %354 = vmatpush1.msra.mxu0 0.0
    %355 = vmatprep.subr.mxu0 0.0
    %356 = vmatpush1.msra.mxu0 0.0
    %357 = vmatprep.subr.mxu0 0.0
    %358 = vmatpush1.msra.mxu0 0.0
    %359 = vmatprep.subr.mxu0 0.0
    %360 = vmatpush1.msra.mxu0 0.0
    %361 = vmatprep.subr.mxu0 0.0
    %362 = vmatpush1.msra.mxu0 0.0
    %363 = vmatprep.subr.mxu0 0.0
    %364 = vmatpush1.msra.mxu0 0.0
    %365 = vmatprep.subr.mxu0 0.0
    %366 = vmatpush1.msra.mxu0 0.0
    %367 = vmatprep.subr.mxu0 0.0
    %368 = vmatpush1.msra.mxu0 0.0
    %369 = vmatprep.subr.mxu0 0.0
    %370 = vmatpush1.msra.mxu0 0.0
    %371 = vmatprep.subr.mxu0 0.0
    %372 = vmatpush1.msra.mxu0 0.0
    %373 = vmatprep.subr.mxu0 0.0
    %374 = vmatpush1.msra.mxu0 0.0
    %375 = vmatprep.subr.mxu0 0.0
    %376 = vmatpush1.msra.mxu0 0.0
    %377 = vmatprep.subr.mxu0 0.0
    %378 = vmatpush1.msra.mxu0 0.0
    %379 = vmatprep.subr.mxu0 0.0
    %380 = vmatpush1.msra.mxu0 0.0
    %381 = vmatprep.subr.mxu0 0.0
    %382 = vmatpush1.msra.mxu0 0.0
    %383 = vmatprep.subr.mxu0 0.0
    %384 = vmatpush1.msra.mxu0 0.0
    %385 = vmatprep.subr.mxu0 0.0
    %386 = vmatpush1.msra.mxu0 0.0
    %387 = vmatprep.subr.mxu0 0.0
    %388 = vmatpush1.msra.mxu0 0.0
    %389 = vmatprep.subr.mxu0 0.0
    %390 = vmatpush1.msra.mxu0 0.0
    %391 = vmatprep.subr.mxu0 0.0
    %392 = vmatpush1.msra.mxu0 0.0
    %393 = vmatprep.subr.mxu0 0.0
    %394 = vmatpush1.msra.mxu0 0.0
    %395 = vmatprep.subr.mxu0 0.0
    %396 = vmatpush1.msra.mxu0 0.0
    %397 = vmatprep.subr.mxu0 0.0
    %398 = vmatpush1.msra.mxu0 0.0
    %399 = vmatprep.subr.mxu0 0.0
    %400 = vmatpush1.msra.mxu0 0.0
    %401 = vmatprep.subr.mxu0 0.0
    %402 = vmatpush1.msra.mxu0 0.0
    %403 = vmatprep.subr.mxu0 0.0
    %404 = vmatpush1.msra.mxu0 0.0
    %405 = vmatprep.subr.mxu0 0.0
    %406 = vmatpush1.msra.mxu0 0.0
    %407 = vmatprep.mubr.f32.mxu0 0.0
    %408 = vmatmul.mubr.f32.gmra.mrb[0].mxu0 %v341
    %v409 = vpop.f32.mrb[0].mxu0
    %v410 = vadd.f32 %v234, %v409
    %v411 = vpop.f32.mrb[0].mxu0
    %412 = vdwg.mxu0
    %v413 = vadd.f32 %v337, %v410
    %v414 = vxor.u32 %v413, 2147483648
    %v415 = vmul.f32 %v414, 1.442695
    %v416 = vpow.pop %v415
    %v417 = vadd.f32 %v416, 1.0
    %v418 = vrcp.pop %v417
    %v419 = vmul.f32 1.0, %v418
    %421 = vrot.lane.b32.xlu0 %v410, 64
    %v422 = vpop.permute.xlu0 %421
    %v424 = vmul.f32 %v419, %v422
    %426 = vrot.lane.b32.xlu0 %v424, 64
    %v427 = vpop.permute.xlu0 %426
    %v429 = vadd.f32 %v337, %v427
    %v430 = vtanh.pop %v429
    %v431 = vsub.f32 1.0, %v419
    %433 = vrot.lane.b32.xlu0 %v430, 96
    %v434 = vpop.permute.xlu0 %433
    %v436 = vmul.f32 %v431, %v434
    %v437 = vmul.f32 %v419, %v335
    %v438 = vadd.f32 %v436, %v437
    %s439 = scalar_lea.vmem [#allocation2], 4
    %v440 = vld [vmem:[%s439] sm:$0x3]
    %442 = vrot.lane.b32.xlu0 %v438, 96
    %v443 = vpop.permute.xlu0 %442
    %v444 = vsel %vm236, %v443, 0
    %446 = vmatprep.subr.mxu0 0.0
    %447 = vmatpush1.msra.mxu0 %v224
    %448 = vmatprep.subr.mxu0 0.0
    %449 = vmatpush1.msra.mxu0 %v225
    %450 = vmatprep.subr.mxu0 0.0
    %451 = vmatpush1.msra.mxu0 %v226
    %452 = vmatprep.subr.mxu0 0.0
    %453 = vmatpush1.msra.mxu0 %v227
    %454 = vmatprep.subr.mxu0 0.0
    %455 = vmatpush1.msra.mxu0 0.0
    %456 = vmatprep.subr.mxu0 0.0
    %457 = vmatpush1.msra.mxu0 0.0
    %458 = vmatprep.subr.mxu0 0.0
    %459 = vmatpush1.msra.mxu0 0.0
    %460 = vmatprep.subr.mxu0 0.0
    %461 = vmatpush1.msra.mxu0 0.0
    %462 = vmatprep.subr.mxu0 0.0
    %463 = vmatpush1.msra.mxu0 0.0
    %464 = vmatprep.subr.mxu0 0.0
    %465 = vmatpush1.msra.mxu0 0.0
    %466 = vmatprep.subr.mxu0 0.0
    %467 = vmatpush1.msra.mxu0 0.0
    %468 = vmatprep.subr.mxu0 0.0
    %469 = vmatpush1.msra.mxu0 0.0
    %470 = vmatprep.subr.mxu0 0.0
    %471 = vmatpush1.msra.mxu0 0.0
    %472 = vmatprep.subr.mxu0 0.0
    %473 = vmatpush1.msra.mxu0 0.0
    %474 = vmatprep.subr.mxu0 0.0
    %475 = vmatpush1.msra.mxu0 0.0
    %476 = vmatprep.subr.mxu0 0.0
    %477 = vmatpush1.msra.mxu0 0.0
    %478 = vmatprep.subr.mxu0 0.0
    %479 = vmatpush1.msra.mxu0 0.0
    %480 = vmatprep.subr.mxu0 0.0
    %481 = vmatpush1.msra.mxu0 0.0
    %482 = vmatprep.subr.mxu0 0.0
    %483 = vmatpush1.msra.mxu0 0.0
    %484 = vmatprep.subr.mxu0 0.0
    %485 = vmatpush1.msra.mxu0 0.0
    %486 = vmatprep.subr.mxu0 0.0
    %487 = vmatpush1.msra.mxu0 0.0
    %488 = vmatprep.subr.mxu0 0.0
    %489 = vmatpush1.msra.mxu0 0.0
    %490 = vmatprep.subr.mxu0 0.0
    %491 = vmatpush1.msra.mxu0 0.0
    %492 = vmatprep.subr.mxu0 0.0
    %493 = vmatpush1.msra.mxu0 0.0
    %494 = vmatprep.subr.mxu0 0.0
    %495 = vmatpush1.msra.mxu0 0.0
    %496 = vmatprep.subr.mxu0 0.0
    %497 = vmatpush1.msra.mxu0 0.0
    %498 = vmatprep.subr.mxu0 0.0
    %499 = vmatpush1.msra.mxu0 0.0
    %500 = vmatprep.subr.mxu0 0.0
    %501 = vmatpush1.msra.mxu0 0.0
    %502 = vmatprep.subr.mxu0 0.0
    %503 = vmatpush1.msra.mxu0 0.0
    %504 = vmatprep.subr.mxu0 0.0
    %505 = vmatpush1.msra.mxu0 0.0
    %506 = vmatprep.subr.mxu0 0.0
    %507 = vmatpush1.msra.mxu0 0.0
    %508 = vmatprep.subr.mxu0 0.0
    %509 = vmatpush1.msra.mxu0 0.0
    %510 = vmatprep.mubr.f32.mxu0 0.0
    %511 = vmatmul.mubr.f32.gmra.mrb[0].mxu0 %v444
    %v512 = vpop.f32.mrb[0].mxu0
    %v513 = vadd.f32 %v234, %v512
    %v514 = vpop.f32.mrb[0].mxu0
    %515 = vdwg.mxu0
    %v516 = vadd.f32 %v440, %v513
    %v517 = vxor.u32 %v516, 2147483648
    %v518 = vmul.f32 %v517, 1.442695
    %v519 = vpow.pop %v518
    %v520 = vadd.f32 %v519, 1.0
    %v521 = vrcp.pop %v520
    %v522 = vmul.f32 1.0, %v521
    %524 = vrot.lane.b32.xlu0 %v513, 64
    %v525 = vpop.permute.xlu0 %524
    %v527 = vmul.f32 %v522, %v525
    %529 = vrot.lane.b32.xlu0 %v527, 64
    %v530 = vpop.permute.xlu0 %529
    %v532 = vadd.f32 %v440, %v530
    %v533 = vtanh.pop %v532
    %v534 = vsub.f32 1.0, %v522
    %536 = vrot.lane.b32.xlu0 %v533, 96
    %v537 = vpop.permute.xlu0 %536
    %v539 = vmul.f32 %v534, %v537
    %v540 = vmul.f32 %v522, %v438
    %v541 = vadd.f32 %v539, %v540
    %s542 = scalar_lea.vmem [#allocation2], 6
    %v543 = vld [vmem:[%s542] sm:$0x3]
    %545 = vrot.lane.b32.xlu0 %v541, 96
    %v546 = vpop.permute.xlu0 %545
    %v547 = vsel %vm236, %v546, 0
    %549 = vmatprep.subr.mxu0 0.0
    %550 = vmatpush1.msra.mxu0 %v224
    %551 = vmatprep.subr.mxu0 0.0
    %552 = vmatpush1.msra.mxu0 %v225
    %553 = vmatprep.subr.mxu0 0.0
    %554 = vmatpush1.msra.mxu0 %v226
    %555 = vmatprep.subr.mxu0 0.0
    %556 = vmatpush1.msra.mxu0 %v227
    %557 = vmatprep.subr.mxu0 0.0
    %558 = vmatpush1.msra.mxu0 0.0
    %559 = vmatprep.subr.mxu0 0.0
    %560 = vmatpush1.msra.mxu0 0.0
    %561 = vmatprep.subr.mxu0 0.0
    %562 = vmatpush1.msra.mxu0 0.0
    %563 = vmatprep.subr.mxu0 0.0
    %564 = vmatpush1.msra.mxu0 0.0
    %565 = vmatprep.subr.mxu0 0.0
    %566 = vmatpush1.msra.mxu0 0.0
    %567 = vmatprep.subr.mxu0 0.0
    %568 = vmatpush1.msra.mxu0 0.0
    %569 = vmatprep.subr.mxu0 0.0
    %570 = vmatpush1.msra.mxu0 0.0
    %571 = vmatprep.subr.mxu0 0.0
    %572 = vmatpush1.msra.mxu0 0.0
    %573 = vmatprep.subr.mxu0 0.0
    %574 = vmatpush1.msra.mxu0 0.0
    %575 = vmatprep.subr.mxu0 0.0
    %576 = vmatpush1.msra.mxu0 0.0
    %577 = vmatprep.subr.mxu0 0.0
    %578 = vmatpush1.msra.mxu0 0.0
    %579 = vmatprep.subr.mxu0 0.0
    %580 = vmatpush1.msra.mxu0 0.0
    %581 = vmatprep.subr.mxu0 0.0
    %582 = vmatpush1.msra.mxu0 0.0
    %583 = vmatprep.subr.mxu0 0.0
    %584 = vmatpush1.msra.mxu0 0.0
    %585 = vmatprep.subr.mxu0 0.0
    %586 = vmatpush1.msra.mxu0 0.0
    %587 = vmatprep.subr.mxu0 0.0
    %588 = vmatpush1.msra.mxu0 0.0
    %589 = vmatprep.subr.mxu0 0.0
    %590 = vmatpush1.msra.mxu0 0.0
    %591 = vmatprep.subr.mxu0 0.0
    %592 = vmatpush1.msra.mxu0 0.0
    %593 = vmatprep.subr.mxu0 0.0
    %594 = vmatpush1.msra.mxu0 0.0
    %595 = vmatprep.subr.mxu0 0.0
    %596 = vmatpush1.msra.mxu0 0.0
    %597 = vmatprep.subr.mxu0 0.0
    %598 = vmatpush1.msra.mxu0 0.0
    %599 = vmatprep.subr.mxu0 0.0
    %600 = vmatpush1.msra.mxu0 0.0
    %601 = vmatprep.subr.mxu0 0.0
    %602 = vmatpush1.msra.mxu0 0.0
    %603 = vmatprep.subr.mxu0 0.0
    %604 = vmatpush1.msra.mxu0 0.0
    %605 = vmatprep.subr.mxu0 0.0
    %606 = vmatpush1.msra.mxu0 0.0
    %607 = vmatprep.subr.mxu0 0.0
    %608 = vmatpush1.msra.mxu0 0.0
    %609 = vmatprep.subr.mxu0 0.0
    %610 = vmatpush1.msra.mxu0 0.0
    %611 = vmatprep.subr.mxu0 0.0
    %612 = vmatpush1.msra.mxu0 0.0
    %613 = vmatprep.mubr.f32.mxu0 0.0
    %614 = vmatmul.mubr.f32.gmra.mrb[0].mxu0 %v547
    %v615 = vpop.f32.mrb[0].mxu0
    %v616 = vadd.f32 %v234, %v615
    %v617 = vpop.f32.mrb[0].mxu0
    %618 = vdwg.mxu0
    %v619 = vadd.f32 %v543, %v616
    %v620 = vxor.u32 %v619, 2147483648
    %v621 = vmul.f32 %v620, 1.442695
    %v622 = vpow.pop %v621
    %v623 = vadd.f32 %v622, 1.0
    %v624 = vrcp.pop %v623
    %v625 = vmul.f32 1.0, %v624
    %627 = vrot.lane.b32.xlu0 %v616, 64
    %v628 = vpop.permute.xlu0 %627
    %v630 = vmul.f32 %v625, %v628
    %632 = vrot.lane.b32.xlu0 %v630, 64
    %v633 = vpop.permute.xlu0 %632
    %v635 = vadd.f32 %v543, %v633
    %v636 = vtanh.pop %v635
    %v637 = vsub.f32 1.0, %v625
    %639 = vrot.lane.b32.xlu0 %v636, 96
    %v640 = vpop.permute.xlu0 %639
    %v642 = vmul.f32 %v637, %v640
    %v643 = vmul.f32 %v625, %v541
    %v644 = vadd.f32 %v642, %v643
    %s645 = scalar_lea.vmem [#allocation2], 8
    %v646 = vld [vmem:[%s645] sm:$0x3]
    %648 = vrot.lane.b32.xlu0 %v644, 96
    %v649 = vpop.permute.xlu0 %648
    %v650 = vsel %vm236, %v649, 0
    %652 = vmatprep.subr.mxu0 0.0
    %653 = vmatpush1.msra.mxu0 %v224
    %654 = vmatprep.subr.mxu0 0.0
    %655 = vmatpush1.msra.mxu0 %v225
    %656 = vmatprep.subr.mxu0 0.0
    %657 = vmatpush1.msra.mxu0 %v226
    %658 = vmatprep.subr.mxu0 0.0
    %659 = vmatpush1.msra.mxu0 %v227
    %660 = vmatprep.subr.mxu0 0.0
    %661 = vmatpush1.msra.mxu0 0.0
    %662 = vmatprep.subr.mxu0 0.0
    %663 = vmatpush1.msra.mxu0 0.0
    %664 = vmatprep.subr.mxu0 0.0
    %665 = vmatpush1.msra.mxu0 0.0
    %666 = vmatprep.subr.mxu0 0.0
    %667 = vmatpush1.msra.mxu0 0.0
    %668 = vmatprep.subr.mxu0 0.0
    %669 = vmatpush1.msra.mxu0 0.0
    %670 = vmatprep.subr.mxu0 0.0
    %671 = vmatpush1.msra.mxu0 0.0
    %672 = vmatprep.subr.mxu0 0.0
    %673 = vmatpush1.msra.mxu0 0.0
    %674 = vmatprep.subr.mxu0 0.0
    %675 = vmatpush1.msra.mxu0 0.0
    %676 = vmatprep.subr.mxu0 0.0
    %677 = vmatpush1.msra.mxu0 0.0
    %678 = vmatprep.subr.mxu0 0.0
    %679 = vmatpush1.msra.mxu0 0.0
    %680 = vmatprep.subr.mxu0 0.0
    %681 = vmatpush1.msra.mxu0 0.0
    %682 = vmatprep.subr.mxu0 0.0
    %683 = vmatpush1.msra.mxu0 0.0
    %684 = vmatprep.subr.mxu0 0.0
    %685 = vmatpush1.msra.mxu0 0.0
    %686 = vmatprep.subr.mxu0 0.0
    %687 = vmatpush1.msra.mxu0 0.0
    %688 = vmatprep.subr.mxu0 0.0
    %689 = vmatpush1.msra.mxu0 0.0
    %690 = vmatprep.subr.mxu0 0.0
    %691 = vmatpush1.msra.mxu0 0.0
    %692 = vmatprep.subr.mxu0 0.0
    %693 = vmatpush1.msra.mxu0 0.0
    %694 = vmatprep.subr.mxu0 0.0
    %695 = vmatpush1.msra.mxu0 0.0
    %696 = vmatprep.subr.mxu0 0.0
    %697 = vmatpush1.msra.mxu0 0.0
    %698 = vmatprep.subr.mxu0 0.0
    %699 = vmatpush1.msra.mxu0 0.0
    %700 = vmatprep.subr.mxu0 0.0
    %701 = vmatpush1.msra.mxu0 0.0
    %702 = vmatprep.subr.mxu0 0.0
    %703 = vmatpush1.msra.mxu0 0.0
    %704 = vmatprep.subr.mxu0 0.0
    %705 = vmatpush1.msra.mxu0 0.0
    %706 = vmatprep.subr.mxu0 0.0
    %707 = vmatpush1.msra.mxu0 0.0
    %708 = vmatprep.subr.mxu0 0.0
    %709 = vmatpush1.msra.mxu0 0.0
    %710 = vmatprep.subr.mxu0 0.0
    %711 = vmatpush1.msra.mxu0 0.0
    %712 = vmatprep.subr.mxu0 0.0
    %713 = vmatpush1.msra.mxu0 0.0
    %714 = vmatprep.subr.mxu0 0.0
    %715 = vmatpush1.msra.mxu0 0.0
    %716 = vmatprep.mubr.f32.mxu0 0.0
    %717 = vmatmul.mubr.f32.gmra.mrb[0].mxu0 %v650
    %v718 = vpop.f32.mrb[0].mxu0
    %v719 = vadd.f32 %v234, %v718
    %v720 = vpop.f32.mrb[0].mxu0
    %721 = vdwg.mxu0
    %v722 = vadd.f32 %v646, %v719
    %v723 = vxor.u32 %v722, 2147483648
    %v724 = vmul.f32 %v723, 1.442695
    %v725 = vpow.pop %v724
    %v726 = vadd.f32 %v725, 1.0
    %v727 = vrcp.pop %v726
    %v728 = vmul.f32 1.0, %v727
    %730 = vrot.lane.b32.xlu0 %v719, 64
    %v731 = vpop.permute.xlu0 %730
    %v733 = vmul.f32 %v728, %v731
    %735 = vrot.lane.b32.xlu0 %v733, 64
    %v736 = vpop.permute.xlu0 %735
    %v738 = vadd.f32 %v646, %v736
    %v739 = vtanh.pop %v738
    %v740 = vsub.f32 1.0, %v728
    %742 = vrot.lane.b32.xlu0 %v739, 96
    %v743 = vpop.permute.xlu0 %742
    %v745 = vmul.f32 %v740, %v743
    %v746 = vmul.f32 %v728, %v644
    %v747 = vadd.f32 %v745, %v746
    %s748 = scalar_lea.vmem [#allocation2], 10
    %v749 = vld [vmem:[%s748] sm:$0x3]
    %751 = vrot.lane.b32.xlu0 %v747, 96
    %v752 = vpop.permute.xlu0 %751
    %v753 = vsel %vm236, %v752, 0
    %755 = vmatprep.subr.mxu0 0.0
    %756 = vmatpush1.msra.mxu0 %v224
    %757 = vmatprep.subr.mxu0 0.0
    %758 = vmatpush1.msra.mxu0 %v225
    %759 = vmatprep.subr.mxu0 0.0
    %760 = vmatpush1.msra.mxu0 %v226
    %761 = vmatprep.subr.mxu0 0.0
    %762 = vmatpush1.msra.mxu0 %v227
    %763 = vmatprep.subr.mxu0 0.0
    %764 = vmatpush1.msra.mxu0 0.0
    %765 = vmatprep.subr.mxu0 0.0
    %766 = vmatpush1.msra.mxu0 0.0
    %767 = vmatprep.subr.mxu0 0.0
    %768 = vmatpush1.msra.mxu0 0.0
    %769 = vmatprep.subr.mxu0 0.0
    %770 = vmatpush1.msra.mxu0 0.0
    %771 = vmatprep.subr.mxu0 0.0
    %772 = vmatpush1.msra.mxu0 0.0
    %773 = vmatprep.subr.mxu0 0.0
    %774 = vmatpush1.msra.mxu0 0.0
    %775 = vmatprep.subr.mxu0 0.0
    %776 = vmatpush1.msra.mxu0 0.0
    %777 = vmatprep.subr.mxu0 0.0
    %778 = vmatpush1.msra.mxu0 0.0
    %779 = vmatprep.subr.mxu0 0.0
    %780 = vmatpush1.msra.mxu0 0.0
    %781 = vmatprep.subr.mxu0 0.0
    %782 = vmatpush1.msra.mxu0 0.0
    %783 = vmatprep.subr.mxu0 0.0
    %784 = vmatpush1.msra.mxu0 0.0
    %785 = vmatprep.subr.mxu0 0.0
    %786 = vmatpush1.msra.mxu0 0.0
    %787 = vmatprep.subr.mxu0 0.0
    %788 = vmatpush1.msra.mxu0 0.0
    %789 = vmatprep.subr.mxu0 0.0
    %790 = vmatpush1.msra.mxu0 0.0
    %791 = vmatprep.subr.mxu0 0.0
    %792 = vmatpush1.msra.mxu0 0.0
    %793 = vmatprep.subr.mxu0 0.0
    %794 = vmatpush1.msra.mxu0 0.0
    %795 = vmatprep.subr.mxu0 0.0
    %796 = vmatpush1.msra.mxu0 0.0
    %797 = vmatprep.subr.mxu0 0.0
    %798 = vmatpush1.msra.mxu0 0.0
    %799 = vmatprep.subr.mxu0 0.0
    %800 = vmatpush1.msra.mxu0 0.0
    %801 = vmatprep.subr.mxu0 0.0
    %802 = vmatpush1.msra.mxu0 0.0
    %803 = vmatprep.subr.mxu0 0.0
    %804 = vmatpush1.msra.mxu0 0.0
    %805 = vmatprep.subr.mxu0 0.0
    %806 = vmatpush1.msra.mxu0 0.0
    %807 = vmatprep.subr.mxu0 0.0
    %808 = vmatpush1.msra.mxu0 0.0
    %809 = vmatprep.subr.mxu0 0.0
    %810 = vmatpush1.msra.mxu0 0.0
    %811 = vmatprep.subr.mxu0 0.0
    %812 = vmatpush1.msra.mxu0 0.0
    %813 = vmatprep.subr.mxu0 0.0
    %814 = vmatpush1.msra.mxu0 0.0
    %815 = vmatprep.subr.mxu0 0.0
    %816 = vmatpush1.msra.mxu0 0.0
    %817 = vmatprep.subr.mxu0 0.0
    %818 = vmatpush1.msra.mxu0 0.0
    %819 = vmatprep.mubr.f32.mxu0 0.0
    %820 = vmatmul.mubr.f32.gmra.mrb[0].mxu0 %v753
    %v821 = vpop.f32.mrb[0].mxu0
    %v822 = vadd.f32 %v234, %v821
    %v823 = vpop.f32.mrb[0].mxu0
    %824 = vdwg.mxu0
    %v825 = vadd.f32 %v749, %v822
    %v826 = vxor.u32 %v825, 2147483648
    %v827 = vmul.f32 %v826, 1.442695
    %v828 = vpow.pop %v827
    %v829 = vadd.f32 %v828, 1.0
    %v830 = vrcp.pop %v829
    %v831 = vmul.f32 1.0, %v830
    %833 = vrot.lane.b32.xlu0 %v822, 64
    %v834 = vpop.permute.xlu0 %833
    %v836 = vmul.f32 %v831, %v834
    %838 = vrot.lane.b32.xlu0 %v836, 64
    %v839 = vpop.permute.xlu0 %838
    %v841 = vadd.f32 %v749, %v839
    %v842 = vtanh.pop %v841
    %v843 = vsub.f32 1.0, %v831
    %845 = vrot.lane.b32.xlu0 %v842, 96
    %v846 = vpop.permute.xlu0 %845
    %v848 = vmul.f32 %v843, %v846
    %v849 = vmul.f32 %v831, %v747
    %v850 = vadd.f32 %v848, %v849
    %s851 = scalar_lea.vmem [#allocation2], 12
    %v852 = vld [vmem:[%s851] sm:$0x3]
    %854 = vrot.lane.b32.xlu0 %v850, 96
    %v855 = vpop.permute.xlu0 %854
    %v856 = vsel %vm236, %v855, 0
    %858 = vmatprep.subr.mxu0 0.0
    %859 = vmatpush1.msra.mxu0 %v224
    %860 = vmatprep.subr.mxu0 0.0
    %861 = vmatpush1.msra.mxu0 %v225
    %862 = vmatprep.subr.mxu0 0.0
    %863 = vmatpush1.msra.mxu0 %v226
    %864 = vmatprep.subr.mxu0 0.0
    %865 = vmatpush1.msra.mxu0 %v227
    %866 = vmatprep.subr.mxu0 0.0
    %867 = vmatpush1.msra.mxu0 0.0
    %868 = vmatprep.subr.mxu0 0.0
    %869 = vmatpush1.msra.mxu0 0.0
    %870 = vmatprep.subr.mxu0 0.0
    %871 = vmatpush1.msra.mxu0 0.0
    %872 = vmatprep.subr.mxu0 0.0
    %873 = vmatpush1.msra.mxu0 0.0
    %874 = vmatprep.subr.mxu0 0.0
    %875 = vmatpush1.msra.mxu0 0.0
    %876 = vmatprep.subr.mxu0 0.0
    %877 = vmatpush1.msra.mxu0 0.0
    %878 = vmatprep.subr.mxu0 0.0
    %879 = vmatpush1.msra.mxu0 0.0
    %880 = vmatprep.subr.mxu0 0.0
    %881 = vmatpush1.msra.mxu0 0.0
    %882 = vmatprep.subr.mxu0 0.0
    %883 = vmatpush1.msra.mxu0 0.0
    %884 = vmatprep.subr.mxu0 0.0
    %885 = vmatpush1.msra.mxu0 0.0
    %886 = vmatprep.subr.mxu0 0.0
    %887 = vmatpush1.msra.mxu0 0.0
    %888 = vmatprep.subr.mxu0 0.0
    %889 = vmatpush1.msra.mxu0 0.0
    %890 = vmatprep.subr.mxu0 0.0
    %891 = vmatpush1.msra.mxu0 0.0
    %892 = vmatprep.subr.mxu0 0.0
    %893 = vmatpush1.msra.mxu0 0.0
    %894 = vmatprep.subr.mxu0 0.0
    %895 = vmatpush1.msra.mxu0 0.0
    %896 = vmatprep.subr.mxu0 0.0
    %897 = vmatpush1.msra.mxu0 0.0
    %898 = vmatprep.subr.mxu0 0.0
    %899 = vmatpush1.msra.mxu0 0.0
    %900 = vmatprep.subr.mxu0 0.0
    %901 = vmatpush1.msra.mxu0 0.0
    %902 = vmatprep.subr.mxu0 0.0
    %903 = vmatpush1.msra.mxu0 0.0
    %904 = vmatprep.subr.mxu0 0.0
    %905 = vmatpush1.msra.mxu0 0.0
    %906 = vmatprep.subr.mxu0 0.0
    %907 = vmatpush1.msra.mxu0 0.0
    %908 = vmatprep.subr.mxu0 0.0
    %909 = vmatpush1.msra.mxu0 0.0
    %910 = vmatprep.subr.mxu0 0.0
    %911 = vmatpush1.msra.mxu0 0.0
    %912 = vmatprep.subr.mxu0 0.0
    %913 = vmatpush1.msra.mxu0 0.0
    %914 = vmatprep.subr.mxu0 0.0
    %915 = vmatpush1.msra.mxu0 0.0
    %916 = vmatprep.subr.mxu0 0.0
    %917 = vmatpush1.msra.mxu0 0.0
    %918 = vmatprep.subr.mxu0 0.0
    %919 = vmatpush1.msra.mxu0 0.0
    %920 = vmatprep.subr.mxu0 0.0
    %921 = vmatpush1.msra.mxu0 0.0
    %922 = vmatprep.mubr.f32.mxu0 0.0
    %923 = vmatmul.mubr.f32.gmra.mrb[0].mxu0 %v856
    %v924 = vpop.f32.mrb[0].mxu0
    %v925 = vadd.f32 %v234, %v924
    %v926 = vpop.f32.mrb[0].mxu0
    %927 = vdwg.mxu0
    %v928 = vadd.f32 %v852, %v925
    %v929 = vxor.u32 %v928, 2147483648
    %v930 = vmul.f32 %v929, 1.442695
    %v931 = vpow.pop %v930
    %v932 = vadd.f32 %v931, 1.0
    %v933 = vrcp.pop %v932
    %v934 = vmul.f32 1.0, %v933
    %936 = vrot.lane.b32.xlu0 %v925, 64
    %v937 = vpop.permute.xlu0 %936
    %v939 = vmul.f32 %v934, %v937
    %941 = vrot.lane.b32.xlu0 %v939, 64
    %v942 = vpop.permute.xlu0 %941
    %v944 = vadd.f32 %v852, %v942
    %v945 = vtanh.pop %v944
    %v946 = vsub.f32 1.0, %v934
    %948 = vrot.lane.b32.xlu0 %v945, 96
    %v949 = vpop.permute.xlu0 %948
    %v951 = vmul.f32 %v946, %v949
    %v952 = vmul.f32 %v934, %v850
    %v953 = vadd.f32 %v951, %v952
    %s954 = scalar_lea.vmem [#allocation2], 14
    %v955 = vld [vmem:[%s954] sm:$0x3]
    %957 = vrot.lane.b32.xlu0 %v953, 96
    %v958 = vpop.permute.xlu0 %957
    %v959 = vsel %vm236, %v958, 0
    %961 = vmatprep.subr.mxu0 0.0
    %962 = vmatpush1.msra.mxu0 %v224
    %963 = vmatprep.subr.mxu0 0.0
    %964 = vmatpush1.msra.mxu0 %v225
    %965 = vmatprep.subr.mxu0 0.0
    %966 = vmatpush1.msra.mxu0 %v226
    %967 = vmatprep.subr.mxu0 0.0
    %968 = vmatpush1.msra.mxu0 %v227
    %969 = vmatprep.subr.mxu0 0.0
    %970 = vmatpush1.msra.mxu0 0.0
    %971 = vmatprep.subr.mxu0 0.0
    %972 = vmatpush1.msra.mxu0 0.0
    %973 = vmatprep.subr.mxu0 0.0
    %974 = vmatpush1.msra.mxu0 0.0
    %975 = vmatprep.subr.mxu0 0.0
    %976 = vmatpush1.msra.mxu0 0.0
    %977 = vmatprep.subr.mxu0 0.0
    %978 = vmatpush1.msra.mxu0 0.0
    %979 = vmatprep.subr.mxu0 0.0
    %980 = vmatpush1.msra.mxu0 0.0
    %981 = vmatprep.subr.mxu0 0.0
    %982 = vmatpush1.msra.mxu0 0.0
    %983 = vmatprep.subr.mxu0 0.0
    %984 = vmatpush1.msra.mxu0 0.0
    %985 = vmatprep.subr.mxu0 0.0
    %986 = vmatpush1.msra.mxu0 0.0
    %987 = vmatprep.subr.mxu0 0.0
    %988 = vmatpush1.msra.mxu0 0.0
    %989 = vmatprep.subr.mxu0 0.0
    %990 = vmatpush1.msra.mxu0 0.0
    %991 = vmatprep.subr.mxu0 0.0
    %992 = vmatpush1.msra.mxu0 0.0
    %993 = vmatprep.subr.mxu0 0.0
    %994 = vmatpush1.msra.mxu0 0.0
    %995 = vmatprep.subr.mxu0 0.0
    %996 = vmatpush1.msra.mxu0 0.0
    %997 = vmatprep.subr.mxu0 0.0
    %998 = vmatpush1.msra.mxu0 0.0
    %999 = vmatprep.subr.mxu0 0.0
    %1000 = vmatpush1.msra.mxu0 0.0
    %1001 = vmatprep.subr.mxu0 0.0
    %1002 = vmatpush1.msra.mxu0 0.0
    %1003 = vmatprep.subr.mxu0 0.0
    %1004 = vmatpush1.msra.mxu0 0.0
    %1005 = vmatprep.subr.mxu0 0.0
    %1006 = vmatpush1.msra.mxu0 0.0
    %1007 = vmatprep.subr.mxu0 0.0
    %1008 = vmatpush1.msra.mxu0 0.0
    %1009 = vmatprep.subr.mxu0 0.0
    %1010 = vmatpush1.msra.mxu0 0.0
    %1011 = vmatprep.subr.mxu0 0.0
    %1012 = vmatpush1.msra.mxu0 0.0
    %1013 = vmatprep.subr.mxu0 0.0
    %1014 = vmatpush1.msra.mxu0 0.0
    %1015 = vmatprep.subr.mxu0 0.0
    %1016 = vmatpush1.msra.mxu0 0.0
    %1017 = vmatprep.subr.mxu0 0.0
    %1018 = vmatpush1.msra.mxu0 0.0
    %1019 = vmatprep.subr.mxu0 0.0
    %1020 = vmatpush1.msra.mxu0 0.0
    %1021 = vmatprep.subr.mxu0 0.0
    %1022 = vmatpush1.msra.mxu0 0.0
    %1023 = vmatprep.subr.mxu0 0.0
    %1024 = vmatpush1.msra.mxu0 0.0
    %1025 = vmatprep.mubr.f32.mxu0 0.0
    %1026 = vmatmul.mubr.f32.gmra.mrb[0].mxu0 %v959
    %v1027 = vpop.f32.mrb[0].mxu0
    %v1028 = vadd.f32 %v234, %v1027
    %v1029 = vpop.f32.mrb[0].mxu0
    %1030 = vdwg.mxu0
    %v1031 = vadd.f32 %v955, %v1028
    %v1032 = vxor.u32 %v1031, 2147483648
    %v1033 = vmul.f32 %v1032, 1.442695
    %v1034 = vpow.pop %v1033
    %v1035 = vadd.f32 %v1034, 1.0
    %v1036 = vrcp.pop %v1035
    %v1037 = vmul.f32 1.0, %v1036
    %1039 = vrot.lane.b32.xlu0 %v1028, 64
    %v1040 = vpop.permute.xlu0 %1039
    %v1042 = vmul.f32 %v1037, %v1040
    %1044 = vrot.lane.b32.xlu0 %v1042, 64
    %v1045 = vpop.permute.xlu0 %1044
    %v1047 = vadd.f32 %v955, %v1045
    %v1048 = vtanh.pop %v1047
    %v1049 = vsub.f32 1.0, %v1037
    %1051 = vrot.lane.b32.xlu0 %v1048, 96
    %v1052 = vpop.permute.xlu0 %1051
    %v1054 = vmul.f32 %v1049, %v1052
    %v1055 = vmul.f32 %v1037, %v953
    %v1056 = vadd.f32 %v1054, %v1055
    %v1057 = vrot.slane %v438, 6
    %v1059 = vrot.slane %v541, 4
    %v1061 = vrot.slane %v644, 2
    %v1063 = vrot.slane %v850, 6
    %v1065 = vrot.slane %v953, 4
    %v1068 = vrot.slane %v1056, 2
    %vm1070 = vcmask 1041408
    %v1071 = vsel %vm1070, %v335, %v1057
    %v1072 = vsel %vm92, %v1071, %v1059
    %vm1073 = vcmask 1045504
    %v1074 = vsel %vm1073, %v1072, %v1061
    %v1075 = vsel %vm1070, %v747, %v1063
    %v1076 = vsel %vm92, %v1075, %v1065
    %v1077 = vsel %vm1073, %v1076, %v1068
    %v1078 = vld [vmem:[%s5] sm:$0xff]
    %v1079 = vld [vmem:[%s5 + $0x8] sm:$0xff]
    %v1080 = vld [vmem:[%s5 + $0x10] sm:$0xff]
    %v1081 = vld [vmem:[%s5 + $0x18] sm:$0xff]
    %v1082 = vld [vmem:[%s6] sm:$0x1]
    %v1084 = vlaneseq
    %v1085 = vshrl.u32 %v1084, 7
    %v1086 = vsub.s32 0, %v1085
    %v1087 = vrot.slane %v1082, %v1086
    %1091 = vrot.lane.b32.xlu0 %v1074, 96
    %v1092 = vpop.permute.xlu0 %1091
    %1093 = vrot.lane.b32.xlu0 %v1077, 96
    %v1094 = vpop.permute.xlu0 %1093
    %v1095 = vsel %vm236, %v1092, 0
    %v1097 = vsel %vm236, %v1094, 0
    %1099 = vmatprep.subr.mxu0 0.0
    %1100 = vmatpush1.msra.mxu0 %v1078
    %1101 = vmatprep.subr.mxu0 0.0
    %1102 = vmatpush1.msra.mxu0 %v1079
    %1103 = vmatprep.subr.mxu0 0.0
    %1104 = vmatpush1.msra.mxu0 %v1080
    %1105 = vmatprep.subr.mxu0 0.0
    %1106 = vmatpush1.msra.mxu0 %v1081
    %1107 = vmatprep.subr.mxu0 0.0
    %1108 = vmatpush1.msra.mxu0 0.0
    %1109 = vmatprep.subr.mxu0 0.0
    %1110 = vmatpush1.msra.mxu0 0.0
    %1111 = vmatprep.subr.mxu0 0.0
    %1112 = vmatpush1.msra.mxu0 0.0
    %1113 = vmatprep.subr.mxu0 0.0
    %1114 = vmatpush1.msra.mxu0 0.0
    %1115 = vmatprep.subr.mxu0 0.0
    %1116 = vmatpush1.msra.mxu0 0.0
    %1117 = vmatprep.subr.mxu0 0.0
    %1118 = vmatpush1.msra.mxu0 0.0
    %1119 = vmatprep.subr.mxu0 0.0
    %1120 = vmatpush1.msra.mxu0 0.0
    %1121 = vmatprep.subr.mxu0 0.0
    %1122 = vmatpush1.msra.mxu0 0.0
    %1123 = vmatprep.subr.mxu0 0.0
    %1124 = vmatpush1.msra.mxu0 0.0
    %1125 = vmatprep.subr.mxu0 0.0
    %1126 = vmatpush1.msra.mxu0 0.0
    %1127 = vmatprep.subr.mxu0 0.0
    %1128 = vmatpush1.msra.mxu0 0.0
    %1129 = vmatprep.subr.mxu0 0.0
    %1130 = vmatpush1.msra.mxu0 0.0
    %1131 = vmatprep.subr.mxu0 0.0
    %1132 = vmatpush1.msra.mxu0 0.0
    %1133 = vmatprep.subr.mxu0 0.0
    %1134 = vmatpush1.msra.mxu0 0.0
    %1135 = vmatprep.subr.mxu0 0.0
    %1136 = vmatpush1.msra.mxu0 0.0
    %1137 = vmatprep.subr.mxu0 0.0
    %1138 = vmatpush1.msra.mxu0 0.0
    %1139 = vmatprep.subr.mxu0 0.0
    %1140 = vmatpush1.msra.mxu0 0.0
    %1141 = vmatprep.subr.mxu0 0.0
    %1142 = vmatpush1.msra.mxu0 0.0
    %1143 = vmatprep.subr.mxu0 0.0
    %1144 = vmatpush1.msra.mxu0 0.0
    %1145 = vmatprep.subr.mxu0 0.0
    %1146 = vmatpush1.msra.mxu0 0.0
    %1147 = vmatprep.subr.mxu0 0.0
    %1148 = vmatpush1.msra.mxu0 0.0
    %1149 = vmatprep.subr.mxu0 0.0
    %1150 = vmatpush1.msra.mxu0 0.0
    %1151 = vmatprep.subr.mxu0 0.0
    %1152 = vmatpush1.msra.mxu0 0.0
    %1153 = vmatprep.subr.mxu0 0.0
    %1154 = vmatpush1.msra.mxu0 0.0
    %1155 = vmatprep.subr.mxu0 0.0
    %1156 = vmatpush1.msra.mxu0 0.0
    %1157 = vmatprep.subr.mxu0 0.0
    %1158 = vmatpush1.msra.mxu0 0.0
    %1159 = vmatprep.subr.mxu0 0.0
    %1160 = vmatpush1.msra.mxu0 0.0
    %1161 = vmatprep.subr.mxu0 0.0
    %1162 = vmatpush1.msra.mxu0 0.0
    %1163 = vmatprep.mubr.f32.mxu0 0.0
    %1164 = vmatmul.mubr.f32.gmra.mrb[0].mxu0 %v1095
    %v1165 = vpop.f32.mrb[0].mxu0
    %v1166 = vadd.f32 %v1087, %v1165
    %v1167 = vpop.f32.mrb[0].mxu0
    %1168 = vmatprep.mubr.f32.mxu0 0.0
    %1169 = vmatmul.mubr.f32.gmra.mrb[0].mxu0 %v1097
    %v1170 = vpop.f32.mrb[0].mxu0
    %v1171 = vadd.f32 %v1087, %v1170
    %v1172 = vpop.f32.mrb[0].mxu0
    %1173 = vdwg.mxu0
    %v1174 = vmax.f32 %v1166, 0.0
    %v1175 = vmax.f32 %v1171, 0.0
    %v1178 = vcombine.high %v1174, %v1174
    %v1180 = vunpack.c.l.s4 1983009808
    %v1181 = vunpack.c.0.s8 %v1180
    %v1182 = vlaneseq
    %v1183 = vshrl.u32 %v1182, 7
    %v1184 = vsub.s32 %v1181, %v1183
    %v1185 = vrot.slane %v1174, %v1184
    %v1187 = vunpack.c.l.s4 1983009808
    %v1188 = vunpack.c.0.s8 %v1187
    %v1189 = vlaneseq
    %v1190 = vshrl.u32 %v1189, 7
    %v1191 = vsub.s32 %v1188, %v1190
    %v1192 = vrot.slane %v1178, %v1191
    %v1193 = vcombine.high %v1185, %v1185
    %v1194 = vcombine.high %v1192, %v1192
    %v1195 = vcombine.high %v1175, %v1175
    %v1197 = vunpack.c.l.s4 1983009808
    %v1198 = vunpack.c.0.s8 %v1197
    %v1199 = vlaneseq
    %v1200 = vshrl.u32 %v1199, 7
    %v1201 = vsub.s32 %v1198, %v1200
    %v1202 = vrot.slane %v1175, %v1201
    %v1204 = vunpack.c.l.s4 1983009808
    %v1205 = vunpack.c.0.s8 %v1204
    %v1206 = vlaneseq
    %v1207 = vshrl.u32 %v1206, 7
    %v1208 = vsub.s32 %v1205, %v1207
    %v1209 = vrot.slane %v1195, %v1208
    %v1210 = vcombine.high %v1202, %v1202
    %v1211 = vcombine.high %v1209, %v1209
    %vm1220 = vcmask 25600
    %1221 = vst.msk [vmem:[%s7] sm:$0x3] %vm1220, %v1185
    %1222 = vst.msk [vmem:[%s7 + $0x2] sm:$0x3] %vm1220, %v1193
    %1223 = vst.msk [vmem:[%s7 + $0x4] sm:$0x3] %vm1220, %v1192
    %1224 = vst.msk [vmem:[%s7 + $0x6] sm:$0x3] %vm1220, %v1194
    %1225 = vst.msk [vmem:[%s7 + $0x8] sm:$0x3] %vm1220, %v1202
    %1226 = vst.msk [vmem:[%s7 + $0xa] sm:$0x3] %vm1220, %v1210
    %1227 = vst.msk [vmem:[%s7 + $0xc] sm:$0x3] %vm1220, %v1209
    %1228 = vst.msk [vmem:[%s7 + $0xe] sm:$0x3] %vm1220, %v1211
    %vm1229 = vcmask 31750
    %1230 = vst.msk [vmem:[#allocation3 - $0x6] sm:$0xc0] %vm1229, %v1171
    // Predicated region
    $region30: #{tpu_custom_call.1} parent=1 // pred_check
      _
    $region31: #{tpu_custom_call.1} parent=1 // pred_check_branch
      %1232 = sbr.rel (0) target = $region33
    $region32: #{tpu_custom_call.1} parent=1 // pred_region
      _
    $region33: #{tpu_custom_call.1} parent=1 // pred_fallthru
      _
    // Predicated region
    $region34: #{tpu_custom_call.1} parent=1 // pred_check
      _
    $region35: #{tpu_custom_call.1} parent=1 // pred_check_branch
      %1234 = sbr.rel (0) target = $region37
    $region36: #{tpu_custom_call.1} parent=1 // pred_region
      %s1236 = ssub.s32 32, 32
      %1237 = vsyncadd [#allocation4], %s1236
      %s1239 = sshll.u32 [#allocation3], 4
      %s1240 = int_to_ptr.vmem [resolvable:$true] %s1239
      %1242 = dma.vmem_to_hbm [thread:$0]  %s1240, 32, %s8, [#allocation4]
    $region37: #{tpu_custom_call.1} parent=1 // pred_fallthru
      _
    // Predicated region
    $region38: #{tpu_custom_call.1} parent=1 // pred_check
      _
    $region39: #{tpu_custom_call.1} parent=1 // pred_check_branch
      %1244 = sbr.rel (0) target = $region41
    $region40: #{tpu_custom_call.1} parent=1 // pred_region
      _
    $region41: #{tpu_custom_call.1} parent=1 // pred_fallthru
      _
    // Predicated region
    $region42: #{tpu_custom_call.1} parent=1 // pred_check
      _
    $region43: #{tpu_custom_call.1} parent=1 // pred_check_branch
      %1246 = sbr.rel (0) target = $region45
    $region44: #{tpu_custom_call.1} parent=1 // pred_region
      %1247 = dma.done [#allocation4], 32
    $region45: #{tpu_custom_call.1} parent=1 // pred_fallthru
      _
    %1248 = vsyncpa [#allocation4], 1

</llo_original>
